<compile_context>
chip_gen: v7x
topology: tpu7x:2x2x1
jax: 0.10.0
libtpu: 0.0.40
codegen_flags: <defaults>
</compile_context>

<pallas_src>
import math

import numpy as np
import jax
import jax.numpy as jnp
from jax.experimental import pallas as pl
from jax.experimental.pallas import tpu as pltpu


def _round_up(x, m):
    return (x + m - 1) // m * m


def _vmem_capacity_bytes():
    """Physical VMEM of the current chip (conservative fallback: v7x 64 MiB)."""
    try:
        cap = getattr(pltpu.get_tpu_info(), "vmem_capacity_bytes", None)
        if cap:
            return int(cap)
    except Exception:
        pass
    return 64 * 1024 * 1024


def _make_fused_kernel(kmax, lout_pad, num_fc):
    """Fused conv(+bias+ReLU+max-pool) + FC stack kernel for one batch tile."""

    def kernel(emb_ref, wc_ref, bc_ref, vlen_ref, *rest):
        out_ref = rest[-1]
        fc_refs = rest[:-1]                       # [w0, b0, w1, b1, ...]
        tb = emb_ref.shape[0]
        e_pad = emb_ref.shape[2]
        totc = wc_ref.shape[2]

        # Per-tap accumulated MXU dots — no materialized im2col slab.
        # Each tap reads a sublane-shifted window of the emb tile and issues one
        # bf16 matmul into the shared f32 accumulator.
        acc = jnp.zeros((tb * lout_pad, totc), jnp.float32)
        for k in range(kmax):                     # static unroll, kmax is small
            x_k = emb_ref[:, k:k + lout_pad, :].reshape(tb * lout_pad, e_pad)
            acc = acc + jnp.dot(x_k, wc_ref[k],
                                preferred_element_type=jnp.float32)
        acc = acc.reshape(tb, lout_pad, totc)
        act = jnp.maximum(acc + bc_ref[...], 0.0)          # bias + ReLU (f32)

        # Mask positions past each branch's valid conv length (padded channels
        # have vlen=0 and are masked everywhere).  0 is max-neutral post-ReLU.
        pos = jax.lax.broadcasted_iota(jnp.int32, (lout_pad, totc), 0)
        valid = pos < vlen_ref[...]                        # (Lout_pad, totC_pad)
        act = jnp.where(valid[None, :, :], act, 0.0)

        h = jnp.max(act, axis=1)                           # (TB, totC_pad) f32

        # FC stack, intermediates stay on-chip.  bf16 operands, f32 accumulate.
        for i in range(num_fc):
            w_ref = fc_refs[2 * i]
            b_ref = fc_refs[2 * i + 1]
            h = jnp.maximum(
                jnp.dot(h.astype(w_ref.dtype), w_ref[...],
                        preferred_element_type=jnp.float32)
                + b_ref[...], 0.0)

        out_ref[...] = h.astype(out_ref.dtype)

    return kernel


def cnn_feature_extractor(params, data, lengths, attention_mask):
    # lengths / attention_mask are accepted but unused, matching the PyTorch forward.
    del lengths, attention_mask

    # Embedding gather (word_emb) -- plain-JAX glue.
    # TODO(synk): fuse the gather into the kernel (PrefetchScalarGridSpec row
    #             gather / manual DMA) to avoid materializing (B, L, E) in HBM.
    emb = jnp.take(params["emb"], data, axis=0)            # (B, L, E) f32
    B, L, E = emb.shape

    kernel_sizes = [w.shape[0] for (w, _) in params["convs"]]
    kernel_num = params["convs"][0][0].shape[2]
    kmax, kmin = max(kernel_sizes), min(kernel_sizes)
    if L < kmax:
        raise ValueError(f"sequence length {L} < max kernel size {kmax}")

    tot_c = kernel_num * len(kernel_sizes)
    e_pad = _round_up(E, 128)                               # lane-dense contraction
    totc_pad = _round_up(tot_c, 128)                        # lane-dense conv output

    lout = L - kmin + 1
    lout_pad = _round_up(lout, 8)
    lpad = _round_up(lout_pad + kmax - 1, 8)                # 8-aligned emb time dim

    # Pack all conv branches into one (Kmax, E_pad, totC_pad) bf16 weight,
    # (1, totC_pad) f32 bias, and per-channel valid conv length (0 for padding).
    w_parts, b_parts, vlen_parts = [], [], []
    for (w, b), K in zip(params["convs"], kernel_sizes):
        w_parts.append(jnp.pad(w, ((0, kmax - K), (0, e_pad - E), (0, 0))))
        b_parts.append(b)
        vlen_parts.append(np.full((kernel_num,), L - K + 1, np.int32))
    w_fused = jnp.concatenate(w_parts, axis=2)              # (Kmax, E_pad, tot_C)
    w_fused = jnp.pad(
        w_fused, ((0, 0), (0, 0), (0, totc_pad - tot_c))).astype(jnp.bfloat16)
    b_fused = jnp.pad(jnp.concatenate(b_parts, axis=1),
                      ((0, 0), (0, totc_pad - tot_c)))      # (1, totC_pad) f32
    vlen_np = np.zeros((1, totc_pad), np.int32)
    vlen_np[0, :tot_c] = np.concatenate(vlen_parts)
    vlen = jnp.asarray(vlen_np)                             # (1, totC_pad) int32

    # FC stack: pad every in/out dim to a multiple of 128 (zero rows for padded
    # inputs, zero cols/bias for padded outputs -> padded lanes stay exactly 0).
    num_fc = len(params["fc"])
    fc_flat = []
    prev_pad = totc_pad
    for (w, b) in params["fc"]:
        din, dout = w.shape
        dout_pad = _round_up(dout, 128)
        wp = jnp.pad(w, ((0, prev_pad - din), (0, dout_pad - dout))
                     ).astype(jnp.bfloat16)
        bp = jnp.pad(b, ((0, 0), (0, dout_pad - dout)))     # f32
        fc_flat += [wp, bp]
        prev_pad = dout_pad
    out_pad = prev_pad                                      # totC_pad if num_fc == 0
    out_dim = params["fc"][-1][0].shape[1] if num_fc else tot_c

    # --- VMEM-aware batch-tile sizing -------------------------------------
    vmem_budget = _vmem_capacity_bytes() * 3 // 4           # ~48 MiB v7x, ~96 MiB v5e/v6e
    const_bytes = 2 * (w_fused.size * 2 + b_fused.size * 4 + vlen.size * 4)
    for w, b in zip(fc_flat[0::2], fc_flat[1::2]):
        const_bytes += 2 * (w.size * 2 + b.size * 4)
    per_row = (2 * lpad * e_pad * 2            # emb tile (bf16, double-buffered)
               + 2 * out_pad * 4               # output tile (f32, double-buffered)
               + 2 * lout_pad * totc_pad * 4   # f32 accumulator + activation
               + 2 * lout_pad * e_pad * 2)     # per-tap shifted-slice temporaries
    avail = max(0, vmem_budget - const_bytes - (4 << 20))   # 4 MiB headroom
    tb_vmem = max(8, (avail // per_row) // 8 * 8)
    two_step = _round_up(-(-B // 2), 8)        # keep >=2 grid steps (v7x: 2 TCs)
    tb = max(8, min(tb_vmem, 256, two_step))
    b_pad = _round_up(B, tb)

    emb_p = jnp.pad(emb, ((0, b_pad - B), (0, lpad - L), (0, e_pad - E))
                    ).astype(jnp.bfloat16)

    in_specs = [
        pl.BlockSpec((tb, lpad, e_pad), lambda i: (i, 0, 0)),        # emb batch tile
        pl.BlockSpec((kmax, e_pad, totc_pad), lambda i: (0, 0, 0)),  # fused conv W
        pl.BlockSpec((1, totc_pad), lambda i: (0, 0)),               # fused conv bias
        pl.BlockSpec((1, totc_pad), lambda i: (0, 0)),               # valid lengths
    ]
    for idx in range(num_fc):
        w = fc_flat[2 * idx]
        b = fc_flat[2 * idx + 1]
        in_specs.append(pl.BlockSpec(w.shape, lambda i: (0, 0)))
        in_specs.append(pl.BlockSpec(b.shape, lambda i: (0, 0)))

    kernel = _make_fused_kernel(kmax, lout_pad, num_fc)

    out = pl.pallas_call(
        kernel,
        out_shape=jax.ShapeDtypeStruct((b_pad, out_pad), jnp.float32),
        grid=(b_pad // tb,),
        in_specs=in_specs,
        out_specs=pl.BlockSpec((tb, out_pad), lambda i: (i, 0)),
        compiler_params=pltpu.CompilerParams(
            dimension_semantics=("parallel",),
            vmem_limit_bytes=int(vmem_budget)),
    )(emb_p, w_fused, b_fused, vlen, *fc_flat)

    return out[:B, :out_dim]


def init_params(key, vocab_size, emb_size, kernel_num, kernel_sizes,
                hidden_size, num_layers):
    n_keys = 1 + 2 * len(kernel_sizes) + 2 * num_layers
    keys = list(jax.random.split(key, n_keys))
    params = {}
    params["emb"] = (jax.random.normal(keys.pop(0), (vocab_size, emb_size),
                                       jnp.float32) * 0.1)
    convs = []
    for K in kernel_sizes:
        fan_in = K * emb_size
        w = jax.random.normal(keys.pop(0), (K, emb_size, kernel_num),
                              jnp.float32) / math.sqrt(fan_in)
        b = jax.random.normal(keys.pop(0), (1, kernel_num), jnp.float32) * 0.01
        convs.append((w, b))
    params["convs"] = convs

    fcs = []
    in_dim = len(kernel_sizes) * kernel_num
    for _ in range(num_layers):
        w = jax.random.normal(keys.pop(0), (in_dim, hidden_size),
                              jnp.float32) / math.sqrt(in_dim)
        b = jax.random.normal(keys.pop(0), (1, hidden_size), jnp.float32) * 0.01
        fcs.append((w, b))
        in_dim = hidden_size
    params["fc"] = fcs
    return params


def reference_forward(params, data):
    """Pure-JAX f32 reference mirroring the PyTorch forward (eval mode)."""
    emb = jnp.take(params["emb"], data, axis=0)
    feats = []
    for (w, b) in params["convs"]:
        K, _, C = w.shape
        L = emb.shape[1]
        Lout = L - K + 1
        acc = jnp.zeros((emb.shape[0], Lout, C), jnp.float32)
        for k in range(K):
            acc = acc + jnp.einsum("ble,ec->blc", emb[:, k:k + Lout, :], w[k])
        act = jnp.maximum(acc + b[None, :, :], 0.0)
        feats.append(jnp.max(act, axis=1))
    x = jnp.concatenate(feats, axis=1)
    for (w, b) in params["fc"]:
        x = jnp.maximum(x @ w + b, 0.0)
    return x


if __name__ == "__main__":
    VOCAB, EMB = 50, 32
    B, L = 2, 16
    KERNEL_NUM = 8
    KERNEL_SIZES = (3, 4, 5)
    HIDDEN = 32
    NUM_LAYERS = 2
    # dropout > 0 in __init__ only adds nn.Dropout modules; identity at inference.

    root = jax.random.PRNGKey(0)
    k_params, k_data = jax.random.split(root)
    params = init_params(k_params, VOCAB, EMB, KERNEL_NUM, KERNEL_SIZES,
                         HIDDEN, NUM_LAYERS)

    data = jax.random.randint(k_data, (B, L), 0, VOCAB, dtype=jnp.int32)
    lengths = jnp.full((B,), L, dtype=jnp.int32)
    attention_mask = jnp.ones((B, L), dtype=jnp.float32)

    out = cnn_feature_extractor(params, data, lengths, attention_mask)
    out = jax.block_until_ready(out)
    assert out.shape == (B, HIDDEN), out.shape

    ref = jax.block_until_ready(reference_forward(params, data))
    # bf16 matmul operands with f32 accumulation -> loosened tolerance.
    assert jnp.allclose(out, ref, atol=2e-2, rtol=2e-2), \
        float(jnp.max(jnp.abs(out - ref)))

    print("KERNEL_OK")
</pallas_src>

<mosaic_0001>
module attributes {stable_mosaic.version = 11 : i64} {
  func.func @kernel(%arg0: i32, %arg1: memref<8x24x128xbf16, #tpu.memory_space<vmem>>, %arg2: memref<5x128x128xbf16, #tpu.memory_space<vmem>>, %arg3: memref<1x128xf32, #tpu.memory_space<vmem>>, %arg4: memref<1x128xi32, #tpu.memory_space<vmem>>, %arg5: memref<128x128xbf16, #tpu.memory_space<vmem>>, %arg6: memref<1x128xf32, #tpu.memory_space<vmem>>, %arg7: memref<128x128xbf16, #tpu.memory_space<vmem>>, %arg8: memref<1x128xf32, #tpu.memory_space<vmem>>, %arg9: memref<8x128xf32, #tpu.memory_space<vmem>>) attributes {dimension_semantics = [#tpu.dimension_semantics<parallel>], iteration_bounds = array<i64: 1>, scalar_prefetch = 0 : i64, scratch_operands = 0 : i64, tpu.core_type = #tpu.core_type<tc>, window_params = [{transform_indices = @transform_0, window_bounds = array<i64: 8, 24, 128>}, {pipeline_mode = #tpu.pipeline_mode<synchronous>, transform_indices = @transform_1, window_bounds = array<i64: 5, 128, 128>}, {pipeline_mode = #tpu.pipeline_mode<synchronous>, transform_indices = @transform_2, window_bounds = array<i64: 1, 128>}, {pipeline_mode = #tpu.pipeline_mode<synchronous>, transform_indices = @transform_3, window_bounds = array<i64: 1, 128>}, {pipeline_mode = #tpu.pipeline_mode<synchronous>, transform_indices = @transform_4, window_bounds = array<i64: 128, 128>}, {pipeline_mode = #tpu.pipeline_mode<synchronous>, transform_indices = @transform_5, window_bounds = array<i64: 1, 128>}, {pipeline_mode = #tpu.pipeline_mode<synchronous>, transform_indices = @transform_6, window_bounds = array<i64: 128, 128>}, {pipeline_mode = #tpu.pipeline_mode<synchronous>, transform_indices = @transform_7, window_bounds = array<i64: 1, 128>}, {transform_indices = @transform_8, window_bounds = array<i64: 8, 128>}]} {
    %cst = arith.constant 0.000000e+00 : f32
    %0 = vector.broadcast %cst : f32 to vector<128x128xf32>
    %c0 = arith.constant 0 : index
    %c0_0 = arith.constant 0 : index
    %c0_1 = arith.constant 0 : index
    %1 = vector.load %arg1[%c0, %c0_0, %c0_1] : memref<8x24x128xbf16, #tpu.memory_space<vmem>>, vector<8x16x128xbf16>
    %2 = vector.shape_cast %1 : vector<8x16x128xbf16> to vector<128x128xbf16>
    %c0_2 = arith.constant 0 : index
    %c0_3 = arith.constant 0 : index
    %c0_4 = arith.constant 0 : index
    %3 = vector.load %arg2[%c0_2, %c0_3, %c0_4] : memref<5x128x128xbf16, #tpu.memory_space<vmem>>, vector<1x128x128xbf16>
    %4 = vector.shape_cast %3 : vector<1x128x128xbf16> to vector<128x128xbf16>
    %cst_5 = arith.constant dense<0.000000e+00> : vector<128x128xf32>
    %5 = tpu.matmul %2, %4, %cst_5 {dimension_numbers = #tpu.dot_dimension_numbers<[1], [0], [0], [1], [0, 0, 1, 1], [], []>} : vector<128x128xbf16>, vector<128x128xbf16>, vector<128x128xf32> -> vector<128x128xf32>
    %6 = arith.addf %0, %5 : vector<128x128xf32>
    %c0_6 = arith.constant 0 : index
    %c1 = arith.constant 1 : index
    %c0_7 = arith.constant 0 : index
    %7 = vector.load %arg1[%c0_6, %c1, %c0_7] : memref<8x24x128xbf16, #tpu.memory_space<vmem>>, vector<8x16x128xbf16>
    %8 = vector.shape_cast %7 : vector<8x16x128xbf16> to vector<128x128xbf16>
    %c1_8 = arith.constant 1 : index
    %c0_9 = arith.constant 0 : index
    %c0_10 = arith.constant 0 : index
    %9 = vector.load %arg2[%c1_8, %c0_9, %c0_10] : memref<5x128x128xbf16, #tpu.memory_space<vmem>>, vector<1x128x128xbf16>
    %10 = vector.shape_cast %9 : vector<1x128x128xbf16> to vector<128x128xbf16>
    %cst_11 = arith.constant dense<0.000000e+00> : vector<128x128xf32>
    %11 = tpu.matmul %8, %10, %cst_11 {dimension_numbers = #tpu.dot_dimension_numbers<[1], [0], [0], [1], [0, 0, 1, 1], [], []>} : vector<128x128xbf16>, vector<128x128xbf16>, vector<128x128xf32> -> vector<128x128xf32>
    %12 = arith.addf %6, %11 : vector<128x128xf32>
    %c0_12 = arith.constant 0 : index
    %c2 = arith.constant 2 : index
    %c0_13 = arith.constant 0 : index
    %13 = vector.load %arg1[%c0_12, %c2, %c0_13] : memref<8x24x128xbf16, #tpu.memory_space<vmem>>, vector<8x16x128xbf16>
    %14 = vector.shape_cast %13 : vector<8x16x128xbf16> to vector<128x128xbf16>
    %c2_14 = arith.constant 2 : index
    %c0_15 = arith.constant 0 : index
    %c0_16 = arith.constant 0 : index
    %15 = vector.load %arg2[%c2_14, %c0_15, %c0_16] : memref<5x128x128xbf16, #tpu.memory_space<vmem>>, vector<1x128x128xbf16>
    %16 = vector.shape_cast %15 : vector<1x128x128xbf16> to vector<128x128xbf16>
    %cst_17 = arith.constant dense<0.000000e+00> : vector<128x128xf32>
    %17 = tpu.matmul %14, %16, %cst_17 {dimension_numbers = #tpu.dot_dimension_numbers<[1], [0], [0], [1], [0, 0, 1, 1], [], []>} : vector<128x128xbf16>, vector<128x128xbf16>, vector<128x128xf32> -> vector<128x128xf32>
    %18 = arith.addf %12, %17 : vector<128x128xf32>
    %c0_18 = arith.constant 0 : index
    %c3 = arith.constant 3 : index
    %c0_19 = arith.constant 0 : index
    %19 = vector.load %arg1[%c0_18, %c3, %c0_19] : memref<8x24x128xbf16, #tpu.memory_space<vmem>>, vector<8x16x128xbf16>
    %20 = vector.shape_cast %19 : vector<8x16x128xbf16> to vector<128x128xbf16>
    %c3_20 = arith.constant 3 : index
    %c0_21 = arith.constant 0 : index
    %c0_22 = arith.constant 0 : index
    %21 = vector.load %arg2[%c3_20, %c0_21, %c0_22] : memref<5x128x128xbf16, #tpu.memory_space<vmem>>, vector<1x128x128xbf16>
    %22 = vector.shape_cast %21 : vector<1x128x128xbf16> to vector<128x128xbf16>
    %cst_23 = arith.constant dense<0.000000e+00> : vector<128x128xf32>
    %23 = tpu.matmul %20, %22, %cst_23 {dimension_numbers = #tpu.dot_dimension_numbers<[1], [0], [0], [1], [0, 0, 1, 1], [], []>} : vector<128x128xbf16>, vector<128x128xbf16>, vector<128x128xf32> -> vector<128x128xf32>
    %24 = arith.addf %18, %23 : vector<128x128xf32>
    %c0_24 = arith.constant 0 : index
    %c4 = arith.constant 4 : index
    %c0_25 = arith.constant 0 : index
    %25 = vector.load %arg1[%c0_24, %c4, %c0_25] : memref<8x24x128xbf16, #tpu.memory_space<vmem>>, vector<8x16x128xbf16>
    %26 = vector.shape_cast %25 : vector<8x16x128xbf16> to vector<128x128xbf16>
    %c4_26 = arith.constant 4 : index
    %c0_27 = arith.constant 0 : index
    %c0_28 = arith.constant 0 : index
    %27 = vector.load %arg2[%c4_26, %c0_27, %c0_28] : memref<5x128x128xbf16, #tpu.memory_space<vmem>>, vector<1x128x128xbf16>
    %28 = vector.shape_cast %27 : vector<1x128x128xbf16> to vector<128x128xbf16>
    %cst_29 = arith.constant dense<0.000000e+00> : vector<128x128xf32>
    %29 = tpu.matmul %26, %28, %cst_29 {dimension_numbers = #tpu.dot_dimension_numbers<[1], [0], [0], [1], [0, 0, 1, 1], [], []>} : vector<128x128xbf16>, vector<128x128xbf16>, vector<128x128xf32> -> vector<128x128xf32>
    %30 = arith.addf %24, %29 : vector<128x128xf32>
    %31 = vector.shape_cast %30 : vector<128x128xf32> to vector<8x16x128xf32>
    %c0_30 = arith.constant 0 : index
    %c0_31 = arith.constant 0 : index
    %32 = vector.load %arg3[%c0_30, %c0_31] : memref<1x128xf32, #tpu.memory_space<vmem>>, vector<1x128xf32>
    %33 = vector.shape_cast %32 : vector<1x128xf32> to vector<1x1x128xf32>
    %34 = vector.broadcast %33 : vector<1x1x128xf32> to vector<8x16x128xf32>
    %35 = arith.addf %31, %34 : vector<8x16x128xf32>
    %cst_32 = arith.constant 0.000000e+00 : f32
    %36 = vector.broadcast %cst_32 : f32 to vector<8x16x128xf32>
    %37 = arith.maximumf %35, %36 : vector<8x16x128xf32>
    %38 = tpu.iota {dimensions = array<i32: 0>} : vector<16x128xi32>
    %c0_33 = arith.constant 0 : index
    %c0_34 = arith.constant 0 : index
    %39 = vector.load %arg4[%c0_33, %c0_34] : memref<1x128xi32, #tpu.memory_space<vmem>>, vector<1x128xi32>
    %40 = vector.broadcast %39 : vector<1x128xi32> to vector<16x128xi32>
    %41 = arith.cmpi slt, %38, %40 : vector<16x128xi32>
    %42 = vector.shape_cast %41 : vector<16x128xi1> to vector<1x16x128xi1>
    %cst_35 = arith.constant 0.000000e+00 : f32
    %43 = vector.shape_cast %42 : vector<1x16x128xi1> to vector<1x16x128xi1>
    %44 = vector.broadcast %43 : vector<1x16x128xi1> to vector<8x16x128xi1>
    %45 = vector.broadcast %cst_35 : f32 to vector<8x16x128xf32>
    %46 = arith.select %44, %37, %45 : vector<8x16x128xi1>, vector<8x16x128xf32>
    %cst_36 = arith.constant dense<0xFF800000> : vector<8x128xf32>
    %47 = vector.multi_reduction <maximumf>, %46, %cst_36 [1] : vector<8x16x128xf32> to vector<8x128xf32>
    %48 = arith.truncf %47 : vector<8x128xf32> to vector<8x128xbf16>
    %c0_37 = arith.constant 0 : index
    %c0_38 = arith.constant 0 : index
    %49 = vector.load %arg5[%c0_37, %c0_38] : memref<128x128xbf16, #tpu.memory_space<vmem>>, vector<128x128xbf16>
    %cst_39 = arith.constant dense<0.000000e+00> : vector<8x128xf32>
    %50 = tpu.matmul %48, %49, %cst_39 {dimension_numbers = #tpu.dot_dimension_numbers<[1], [0], [0], [1], [0, 0, 1, 1], [], []>} : vector<8x128xbf16>, vector<128x128xbf16>, vector<8x128xf32> -> vector<8x128xf32>
    %c0_40 = arith.constant 0 : index
    %c0_41 = arith.constant 0 : index
    %51 = vector.load %arg6[%c0_40, %c0_41] : memref<1x128xf32, #tpu.memory_space<vmem>>, vector<1x128xf32>
    %52 = vector.broadcast %51 : vector<1x128xf32> to vector<8x128xf32>
    %53 = arith.addf %50, %52 : vector<8x128xf32>
    %cst_42 = arith.constant 0.000000e+00 : f32
    %54 = vector.broadcast %cst_42 : f32 to vector<8x128xf32>
    %55 = arith.maximumf %53, %54 : vector<8x128xf32>
    %56 = arith.truncf %55 : vector<8x128xf32> to vector<8x128xbf16>
    %c0_43 = arith.constant 0 : index
    %c0_44 = arith.constant 0 : index
    %57 = vector.load %arg7[%c0_43, %c0_44] : memref<128x128xbf16, #tpu.memory_space<vmem>>, vector<128x128xbf16>
    %cst_45 = arith.constant dense<0.000000e+00> : vector<8x128xf32>
    %58 = tpu.matmul %56, %57, %cst_45 {dimension_numbers = #tpu.dot_dimension_numbers<[1], [0], [0], [1], [0, 0, 1, 1], [], []>} : vector<8x128xbf16>, vector<128x128xbf16>, vector<8x128xf32> -> vector<8x128xf32>
    %c0_46 = arith.constant 0 : index
    %c0_47 = arith.constant 0 : index
    %59 = vector.load %arg8[%c0_46, %c0_47] : memref<1x128xf32, #tpu.memory_space<vmem>>, vector<1x128xf32>
    %60 = vector.broadcast %59 : vector<1x128xf32> to vector<8x128xf32>
    %61 = arith.addf %58, %60 : vector<8x128xf32>
    %cst_48 = arith.constant 0.000000e+00 : f32
    %62 = vector.broadcast %cst_48 : f32 to vector<8x128xf32>
    %63 = arith.maximumf %61, %62 : vector<8x128xf32>
    %c0_49 = arith.constant 0 : index
    %c0_50 = arith.constant 0 : index
    %64 = vector.load %arg9[%c0_49, %c0_50] : memref<8x128xf32, #tpu.memory_space<vmem>>, vector<8x128xf32>
    tpu.vector_store %arg9[%c0_49, %c0_50], %63 {strides = array<i32>} : memref<8x128xf32, #tpu.memory_space<vmem>>, vector<8x128xf32>,
    return
  }
  func.func @transform_0(%arg0: i32) -> (i32, i32, i32) {
    %c0_i32 = arith.constant 0 : i32
    %c0_i32_0 = arith.constant 0 : i32
    %c0_i32_1 = arith.constant 0 : i32
    return %arg0, %c0_i32, %c0_i32_0 : i32, i32, i32
  }
  func.func @transform_1(%arg0: i32) -> (i32, i32, i32) {
    %c0_i32 = arith.constant 0 : i32
    %c0_i32_0 = arith.constant 0 : i32
    %c0_i32_1 = arith.constant 0 : i32
    %c0_i32_2 = arith.constant 0 : i32
    return %c0_i32, %c0_i32_0, %c0_i32_1 : i32, i32, i32
  }
  func.func @transform_2(%arg0: i32) -> (i32, i32) {
    %c0_i32 = arith.constant 0 : i32
    %c0_i32_0 = arith.constant 0 : i32
    %c0_i32_1 = arith.constant 0 : i32
    return %c0_i32, %c0_i32_0 : i32, i32
  }
  func.func @transform_3(%arg0: i32) -> (i32, i32) {
    %c0_i32 = arith.constant 0 : i32
    %c0_i32_0 = arith.constant 0 : i32
    %c0_i32_1 = arith.constant 0 : i32
    return %c0_i32, %c0_i32_0 : i32, i32
  }
  func.func @transform_4(%arg0: i32) -> (i32, i32) {
    %c0_i32 = arith.constant 0 : i32
    %c0_i32_0 = arith.constant 0 : i32
    %c0_i32_1 = arith.constant 0 : i32
    return %c0_i32, %c0_i32_0 : i32, i32
  }
  func.func @transform_5(%arg0: i32) -> (i32, i32) {
    %c0_i32 = arith.constant 0 : i32
    %c0_i32_0 = arith.constant 0 : i32
    %c0_i32_1 = arith.constant 0 : i32
    return %c0_i32, %c0_i32_0 : i32, i32
  }
  func.func @transform_6(%arg0: i32) -> (i32, i32) {
    %c0_i32 = arith.constant 0 : i32
    %c0_i32_0 = arith.constant 0 : i32
    %c0_i32_1 = arith.constant 0 : i32
    return %c0_i32, %c0_i32_0 : i32, i32
  }
  func.func @transform_7(%arg0: i32) -> (i32, i32) {
    %c0_i32 = arith.constant 0 : i32
    %c0_i32_0 = arith.constant 0 : i32
    %c0_i32_1 = arith.constant 0 : i32
    return %c0_i32, %c0_i32_0 : i32, i32
  }
  func.func @transform_8(%arg0: i32) -> (i32, i32) {
    %c0_i32 = arith.constant 0 : i32
    %c0_i32_0 = arith.constant 0 : i32
    return %arg0, %c0_i32 : i32, i32
  }
}

</mosaic_0001>

<llo_original>
// kernel: tpu_custom_call.1
$region0: #{tpu_custom_call.1}
  #allocation0 [shape = 'u32[]', space=smem, size = 0x4, offset = 0x4, fixed_abs, tag = 'smem constant byte address 0x4 - core index']
  #allocation1 [shape = 'u32[144,128]{1,0:T(1,128)}', space=vmem, size = 0x12000, scoped, tag = 'internal scratch']
  %s0 = inlined_call_operand.hbm [shape: bf16[8,24,128], index: 0, kind: input, shape index: {}]
  %s1 = inlined_call_operand.hbm [shape: bf16[5,128,128], index: 1, kind: input, shape index: {}]
  %s2 = inlined_call_operand.vmem [shape: f32[1,128], index: 2, kind: input, shape index: {}]
  %s3 = inlined_call_operand.vmem [shape: s32[1,128], index: 3, kind: input, shape index: {}]
  %s4 = inlined_call_operand.hbm [shape: bf16[128,128], index: 4, kind: input, shape index: {}]
  %s5 = inlined_call_operand.vmem [shape: f32[1,128], index: 5, kind: input, shape index: {}]
  %s6 = inlined_call_operand.hbm [shape: bf16[128,128], index: 6, kind: input, shape index: {}]
  %s7 = inlined_call_operand.vmem [shape: f32[1,128], index: 7, kind: input, shape index: {}]
  %s8 = inlined_call_operand.hbm [shape: f32[8,128], index: 8, kind: output, shape index: {}]
  %s9 = sld [smem:[#allocation0]]
  $region58: #{tpu_custom_call.1} parent=0
    _
  %s11 = ssub.s32 1, %s9
  %s12 = scalar_select 0, %s11, %s9
  $region1: #{tpu_custom_call.1} parent=0
    #allocation2 [shape = 'u8[49152]{0}', space=vmem, size = 0xc000, scoped, tag = 'input window, operand 0, single buffered']
    #allocation3 [shape = 's32[1]{0}', space=sflag, size = 0x4, scoped, tag = 'scoped memory for tpu_custom_call.1']
    #allocation4 [shape = 's32[1]{0}', space=sflag, size = 0x4, scoped, tag = 'scoped memory for tpu_custom_call.1']
    #allocation5 [shape = 'u8[163840]{0}', space=vmem, size = 0x28000, scoped, tag = 'input window, operand 1, single buffered']
    #allocation6 [shape = 's32[1]{0}', space=sflag, size = 0x4, scoped, tag = 'scoped memory for tpu_custom_call.1']
    #allocation7 [shape = 'u8[32768]{0}', space=vmem, size = 0x8000, scoped, tag = 'input window, operand 4, single buffered']
    #allocation8 [shape = 'u8[32768]{0}', space=vmem, size = 0x8000, scoped, tag = 'input window, operand 6, single buffered']
    #allocation9 [shape = 's32[1]{0}', space=sflag, size = 0x4, scoped, tag = 'scoped memory for tpu_custom_call.1']
    #allocation10 [shape = 'u8[4096]{0}', space=vmem, size = 0x1000, scoped, tag = 'output window, operand 0, single buffered']
    %13 = vsyncpa [#allocation3], 0
    %14 = vsyncpa [#allocation6], 0
    %15 = vsyncpa [#allocation9], 0
    %16 = vsyncpa [#allocation4], 0
    // Predicated region
    $region2: #{tpu_custom_call.1} parent=1 // pred_check
      _
    $region3: #{tpu_custom_call.1} parent=1 // pred_check_branch
      %18 = sbr.rel (0) target = $region5
    $region4: #{tpu_custom_call.1} parent=1 // pred_region
      %s20 = ssub.s32 1536, 1536
      %21 = vsyncadd [#allocation3], %s20
      %s22 = sshll.u32 [#allocation2], 4
      %s23 = int_to_ptr.vmem [resolvable:$true] %s22
      %28 = dma.hbm_to_vmem [thread:$0]  %s0, 1536, %s23, [#allocation3], 64, 64, 4
    $region5: #{tpu_custom_call.1} parent=1 // pred_fallthru
      _
    // Predicated region
    $region6: #{tpu_custom_call.1} parent=1 // pred_check
      _
    $region7: #{tpu_custom_call.1} parent=1 // pred_check_branch
      %30 = sbr.rel (0) target = $region9
    $region8: #{tpu_custom_call.1} parent=1 // pred_region
      %s32 = ssub.s32 5120, 5120
      %33 = vsyncadd [#allocation6], %s32
      %s34 = sshll.u32 [#allocation5], 4
      %s35 = int_to_ptr.vmem [resolvable:$true] %s34
      %40 = dma.hbm_to_vmem [thread:$0]  %s1, 5120, %s35, [#allocation6], 64, 64, 4
    $region9: #{tpu_custom_call.1} parent=1 // pred_fallthru
      _
    // Predicated region
    $region10: #{tpu_custom_call.1} parent=1 // pred_check
      _
    $region11: #{tpu_custom_call.1} parent=1 // pred_check_branch
      %42 = sbr.rel (0) target = $region13
    $region12: #{tpu_custom_call.1} parent=1 // pred_region
      _
    $region13: #{tpu_custom_call.1} parent=1 // pred_fallthru
      _
    // Predicated region
    $region14: #{tpu_custom_call.1} parent=1 // pred_check
      _
    $region15: #{tpu_custom_call.1} parent=1 // pred_check_branch
      %44 = sbr.rel (0) target = $region17
    $region16: #{tpu_custom_call.1} parent=1 // pred_region
      _
    $region17: #{tpu_custom_call.1} parent=1 // pred_fallthru
      _
    // Predicated region
    $region18: #{tpu_custom_call.1} parent=1 // pred_check
      _
    $region19: #{tpu_custom_call.1} parent=1 // pred_check_branch
      %46 = sbr.rel (0) target = $region21
    $region20: #{tpu_custom_call.1} parent=1 // pred_region
      %s48 = ssub.s32 1024, 1024
      %49 = vsyncadd [#allocation6], %s48
      %s50 = sshll.u32 [#allocation7], 4
      %s51 = int_to_ptr.vmem [resolvable:$true] %s50
      %56 = dma.hbm_to_vmem [thread:$0]  %s4, 1024, %s51, [#allocation6], 64, 64, 4
    $region21: #{tpu_custom_call.1} parent=1 // pred_fallthru
      _
    // Predicated region
    $region22: #{tpu_custom_call.1} parent=1 // pred_check
      _
    $region23: #{tpu_custom_call.1} parent=1 // pred_check_branch
      %58 = sbr.rel (0) target = $region25
    $region24: #{tpu_custom_call.1} parent=1 // pred_region
      _
    $region25: #{tpu_custom_call.1} parent=1 // pred_fallthru
      _
    // Predicated region
    $region26: #{tpu_custom_call.1} parent=1 // pred_check
      _
    $region27: #{tpu_custom_call.1} parent=1 // pred_check_branch
      %60 = sbr.rel (0) target = $region29
    $region28: #{tpu_custom_call.1} parent=1 // pred_region
      %s62 = ssub.s32 1024, 1024
      %63 = vsyncadd [#allocation9], %s62
      %s64 = sshll.u32 [#allocation8], 4
      %s65 = int_to_ptr.vmem [resolvable:$true] %s64
      %70 = dma.hbm_to_vmem [thread:$0]  %s6, 1024, %s65, [#allocation9], 64, 64, 4
    $region29: #{tpu_custom_call.1} parent=1 // pred_fallthru
      _
    // Predicated region
    $region30: #{tpu_custom_call.1} parent=1 // pred_check
      _
    $region31: #{tpu_custom_call.1} parent=1 // pred_check_branch
      %72 = sbr.rel (0) target = $region33
    $region32: #{tpu_custom_call.1} parent=1 // pred_region
      _
    $region33: #{tpu_custom_call.1} parent=1 // pred_fallthru
      _
    // Predicated region
    $region34: #{tpu_custom_call.1} parent=1 // pred_check
      _
    $region35: #{tpu_custom_call.1} parent=1 // pred_check_branch
      %74 = sbr.rel (0) target = $region37
    $region36: #{tpu_custom_call.1} parent=1 // pred_region
      %75 = dma.done [#allocation3], 1536
    $region37: #{tpu_custom_call.1} parent=1 // pred_fallthru
      _
    // Predicated region
    $region38: #{tpu_custom_call.1} parent=1 // pred_check
      _
    $region39: #{tpu_custom_call.1} parent=1 // pred_check_branch
      %77 = sbr.rel (0) target = $region41
    $region40: #{tpu_custom_call.1} parent=1 // pred_region
      %78 = dma.done [#allocation6], 5120
    $region41: #{tpu_custom_call.1} parent=1 // pred_fallthru
      _
    // Predicated region
    $region42: #{tpu_custom_call.1} parent=1 // pred_check
      _
    $region43: #{tpu_custom_call.1} parent=1 // pred_check_branch
      %80 = sbr.rel (0) target = $region45
    $region44: #{tpu_custom_call.1} parent=1 // pred_region
      %81 = dma.done [#allocation6], 1024
    $region45: #{tpu_custom_call.1} parent=1 // pred_fallthru
      _
    // Predicated region
    $region46: #{tpu_custom_call.1} parent=1 // pred_check
      _
    $region47: #{tpu_custom_call.1} parent=1 // pred_check_branch
      %83 = sbr.rel (0) target = $region49
    $region48: #{tpu_custom_call.1} parent=1 // pred_region
      %84 = dma.done [#allocation9], 1024
    $region49: #{tpu_custom_call.1} parent=1 // pred_fallthru
      _
    %v86 = vld [vmem:[#allocation2] sm:$0xf]
    %v87 = vld [vmem:[#allocation2 + $0x4] sm:$0xf]
    %v88 = vld [vmem:[#allocation2 + $0xc] sm:$0xf]
    %v89 = vld [vmem:[#allocation2 + $0x10] sm:$0xf]
    %v90 = vld [vmem:[#allocation2 + $0x18] sm:$0xf]
    %v91 = vld [vmem:[#allocation2 + $0x1c] sm:$0xf]
    %v92 = vld [vmem:[#allocation2 + $0x24] sm:$0xf]
    %v93 = vld [vmem:[#allocation2 + $0x28] sm:$0xf]
    %v94 = vld [vmem:[#allocation2 + $0x30] sm:$0xf]
    %v95 = vld [vmem:[#allocation2 + $0x34] sm:$0xf]
    %v96 = vld [vmem:[#allocation2 + $0x3c] sm:$0xf]
    %v97 = vld [vmem:[#allocation2 + $0x40] sm:$0xf]
    %v98 = vld [vmem:[#allocation2 + $0x48] sm:$0xf]
    %v99 = vld [vmem:[#allocation2 + $0x4c] sm:$0xf]
    %v100 = vld [vmem:[#allocation2 + $0x54] sm:$0xf]
    %v101 = vld [vmem:[#allocation2 + $0x58] sm:$0xf]
    %v102 = vld [vmem:[#allocation5] sm:$0xf]
    %v103 = vld [vmem:[#allocation5 + $0x4] sm:$0xf]
    %v104 = vld [vmem:[#allocation5 + $0x8] sm:$0xf]
    %v105 = vld [vmem:[#allocation5 + $0xc] sm:$0xf]
    %v106 = vld [vmem:[#allocation5 + $0x10] sm:$0xf]
    %v107 = vld [vmem:[#allocation5 + $0x14] sm:$0xf]
    %v108 = vld [vmem:[#allocation5 + $0x18] sm:$0xf]
    %v109 = vld [vmem:[#allocation5 + $0x1c] sm:$0xf]
    %v110 = vld [vmem:[#allocation5 + $0x20] sm:$0xf]
    %v111 = vld [vmem:[#allocation5 + $0x24] sm:$0xf]
    %v112 = vld [vmem:[#allocation5 + $0x28] sm:$0xf]
    %v113 = vld [vmem:[#allocation5 + $0x2c] sm:$0xf]
    %v114 = vld [vmem:[#allocation5 + $0x30] sm:$0xf]
    %v115 = vld [vmem:[#allocation5 + $0x34] sm:$0xf]
    %v116 = vld [vmem:[#allocation5 + $0x38] sm:$0xf]
    %v117 = vld [vmem:[#allocation5 + $0x3c] sm:$0xf]
    %v118 = vld [vmem:[#allocation2] sm:$0xf]
    %v119 = vld [vmem:[#allocation2 + $0x4] sm:$0xf]
    %v120 = vld [vmem:[#allocation2 + $0x8] sm:$0x1]
    %v121 = vld [vmem:[#allocation2 + $0xc] sm:$0xf]
    %v122 = vld [vmem:[#allocation2 + $0x10] sm:$0xf]
    %v123 = vld [vmem:[#allocation2 + $0x14] sm:$0x1]
    %v124 = vld [vmem:[#allocation2 + $0x18] sm:$0xf]
    %v125 = vld [vmem:[#allocation2 + $0x1c] sm:$0xf]
    %v126 = vld [vmem:[#allocation2 + $0x20] sm:$0x1]
    %v127 = vld [vmem:[#allocation2 + $0x24] sm:$0xf]
    %v128 = vld [vmem:[#allocation2 + $0x28] sm:$0xf]
    %v129 = vld [vmem:[#allocation2 + $0x2c] sm:$0x1]
    %v130 = vld [vmem:[#allocation2 + $0x30] sm:$0xf]
    %v131 = vld [vmem:[#allocation2 + $0x34] sm:$0xf]
    %v132 = vld [vmem:[#allocation2 + $0x38] sm:$0x1]
    %v133 = vld [vmem:[#allocation2 + $0x3c] sm:$0xf]
    %v134 = vld [vmem:[#allocation2 + $0x40] sm:$0xf]
    %v135 = vld [vmem:[#allocation2 + $0x44] sm:$0x1]
    %v136 = vld [vmem:[#allocation2 + $0x48] sm:$0xf]
    %v137 = vld [vmem:[#allocation2 + $0x4c] sm:$0xf]
    %v138 = vld [vmem:[#allocation2 + $0x50] sm:$0x1]
    %v139 = vld [vmem:[#allocation2 + $0x54] sm:$0xf]
    %v140 = vld [vmem:[#allocation2 + $0x58] sm:$0xf]
    %v141 = vld [vmem:[#allocation2 + $0x5c] sm:$0x1]
    %vm142 = vsmask.f32 3328
    %vm143 = vsmask.f32 7440
    %vm144 = vmor %vm142, %vm143
    %v146 = vshrl.u32 %v118, 16
    %v148 = vrot.slane %v146, 4
    %v149 = vshll.u32 %v118, 16
    %v151 = vrot.slane %v149, 5
    %v152 = vor.u32 %v148, %v151
    %v153 = vrot.slane %v152, 4
    %v155 = vshll.u32 %v119, 16
    %v157 = vrot.slane %v155, 5
    %v158 = vsel %vm144, %v153, %v157
    %v159 = vshrl.u32 %v119, 16
    %v161 = vrot.slane %v159, 4
    %v162 = vor.u32 %v161, %v157
    %v163 = vrot.slane %v162, 4
    %v165 = vshll.u32 %v120, 16
    %v167 = vrot.slane %v165, 5
    %v168 = vsel %vm144, %v163, %v167
    %v170 = vshrl.u32 %v121, 16
    %v172 = vrot.slane %v170, 4
    %v173 = vshll.u32 %v121, 16
    %v175 = vrot.slane %v173, 5
    %v176 = vor.u32 %v172, %v175
    %v177 = vrot.slane %v176, 4
    %v179 = vshll.u32 %v122, 16
    %v181 = vrot.slane %v179, 5
    %v182 = vsel %vm144, %v177, %v181
    %v183 = vshrl.u32 %v122, 16
    %v185 = vrot.slane %v183, 4
    %v186 = vor.u32 %v185, %v181
    %v187 = vrot.slane %v186, 4
    %v189 = vshll.u32 %v123, 16
    %v191 = vrot.slane %v189, 5
    %v192 = vsel %vm144, %v187, %v191
    %v194 = vshrl.u32 %v124, 16
    %v196 = vrot.slane %v194, 4
    %v197 = vshll.u32 %v124, 16
    %v199 = vrot.slane %v197, 5
    %v200 = vor.u32 %v196, %v199
    %v201 = vrot.slane %v200, 4
    %v203 = vshll.u32 %v125, 16
    %v205 = vrot.slane %v203, 5
    %v206 = vsel %vm144, %v201, %v205
    %v207 = vshrl.u32 %v125, 16
    %v209 = vrot.slane %v207, 4
    %v210 = vor.u32 %v209, %v205
    %v211 = vrot.slane %v210, 4
    %v213 = vshll.u32 %v126, 16
    %v215 = vrot.slane %v213, 5
    %v216 = vsel %vm144, %v211, %v215
    %v218 = vshrl.u32 %v127, 16
    %v220 = vrot.slane %v218, 4
    %v221 = vshll.u32 %v127, 16
    %v223 = vrot.slane %v221, 5
    %v224 = vor.u32 %v220, %v223
    %v225 = vrot.slane %v224, 4
    %v227 = vshll.u32 %v128, 16
    %v229 = vrot.slane %v227, 5
    %v230 = vsel %vm144, %v225, %v229
    %v231 = vshrl.u32 %v128, 16
    %v233 = vrot.slane %v231, 4
    %v234 = vor.u32 %v233, %v229
    %v235 = vrot.slane %v234, 4
    %v237 = vshll.u32 %v129, 16
    %v239 = vrot.slane %v237, 5
    %v240 = vsel %vm144, %v235, %v239
    %v242 = vshrl.u32 %v130, 16
    %v244 = vrot.slane %v242, 4
    %v245 = vshll.u32 %v130, 16
    %v247 = vrot.slane %v245, 5
    %v248 = vor.u32 %v244, %v247
    %v249 = vrot.slane %v248, 4
    %v251 = vshll.u32 %v131, 16
    %v253 = vrot.slane %v251, 5
    %v254 = vsel %vm144, %v249, %v253
    %v255 = vshrl.u32 %v131, 16
    %v257 = vrot.slane %v255, 4
    %v258 = vor.u32 %v257, %v253
    %v259 = vrot.slane %v258, 4
    %v261 = vshll.u32 %v132, 16
    %v263 = vrot.slane %v261, 5
    %v264 = vsel %vm144, %v259, %v263
    %v266 = vshrl.u32 %v133, 16
    %v268 = vrot.slane %v266, 4
    %v269 = vshll.u32 %v133, 16
    %v271 = vrot.slane %v269, 5
    %v272 = vor.u32 %v268, %v271
    %v273 = vrot.slane %v272, 4
    %v275 = vshll.u32 %v134, 16
    %v277 = vrot.slane %v275, 5
    %v278 = vsel %vm144, %v273, %v277
    %v279 = vshrl.u32 %v134, 16
    %v281 = vrot.slane %v279, 4
    %v282 = vor.u32 %v281, %v277
    %v283 = vrot.slane %v282, 4
    %v285 = vshll.u32 %v135, 16
    %v287 = vrot.slane %v285, 5
    %v288 = vsel %vm144, %v283, %v287
    %v290 = vshrl.u32 %v136, 16
    %v292 = vrot.slane %v290, 4
    %v293 = vshll.u32 %v136, 16
    %v295 = vrot.slane %v293, 5
    %v296 = vor.u32 %v292, %v295
    %v297 = vrot.slane %v296, 4
    %v299 = vshll.u32 %v137, 16
    %v301 = vrot.slane %v299, 5
    %v302 = vsel %vm144, %v297, %v301
    %v303 = vshrl.u32 %v137, 16
    %v305 = vrot.slane %v303, 4
    %v306 = vor.u32 %v305, %v301
    %v307 = vrot.slane %v306, 4
    %v309 = vshll.u32 %v138, 16
    %v311 = vrot.slane %v309, 5
    %v312 = vsel %vm144, %v307, %v311
    %v314 = vshrl.u32 %v139, 16
    %v316 = vrot.slane %v314, 4
    %v317 = vshll.u32 %v139, 16
    %v319 = vrot.slane %v317, 5
    %v320 = vor.u32 %v316, %v319
    %v321 = vrot.slane %v320, 4
    %v323 = vshll.u32 %v140, 16
    %v325 = vrot.slane %v323, 5
    %v326 = vsel %vm144, %v321, %v325
    %v327 = vshrl.u32 %v140, 16
    %v329 = vrot.slane %v327, 4
    %v330 = vor.u32 %v329, %v325
    %v331 = vrot.slane %v330, 4
    %v333 = vshll.u32 %v141, 16
    %v335 = vrot.slane %v333, 5
    %v336 = vsel %vm144, %v331, %v335
    %s337 = scalar_lea.vmem [#allocation5], 64
    %v338 = vld [vmem:[%s337] sm:$0xf]
    %v339 = vld [vmem:[%s337 + $0x4] sm:$0xf]
    %v340 = vld [vmem:[%s337 + $0x8] sm:$0xf]
    %v341 = vld [vmem:[%s337 + $0xc] sm:$0xf]
    %v342 = vld [vmem:[%s337 + $0x10] sm:$0xf]
    %v343 = vld [vmem:[%s337 + $0x14] sm:$0xf]
    %v344 = vld [vmem:[%s337 + $0x18] sm:$0xf]
    %v345 = vld [vmem:[%s337 + $0x1c] sm:$0xf]
    %v346 = vld [vmem:[%s337 + $0x20] sm:$0xf]
    %v347 = vld [vmem:[%s337 + $0x24] sm:$0xf]
    %v348 = vld [vmem:[%s337 + $0x28] sm:$0xf]
    %v349 = vld [vmem:[%s337 + $0x2c] sm:$0xf]
    %v350 = vld [vmem:[%s337 + $0x30] sm:$0xf]
    %v351 = vld [vmem:[%s337 + $0x34] sm:$0xf]
    %v352 = vld [vmem:[%s337 + $0x38] sm:$0xf]
    %v353 = vld [vmem:[%s337 + $0x3c] sm:$0xf]
    %v354 = vunpack.c.l.b16 %v158
    %v355 = vunpack.c.l.b16 %v168
    %v356 = vunpack.c.l.b16 %v182
    %v357 = vunpack.c.l.b16 %v192
    %v358 = vunpack.c.l.b16 %v206
    %v359 = vunpack.c.l.b16 %v216
    %v360 = vunpack.c.l.b16 %v230
    %v361 = vunpack.c.l.b16 %v240
    %v362 = vunpack.c.l.b16 %v254
    %v363 = vunpack.c.l.b16 %v264
    %v364 = vunpack.c.l.b16 %v278
    %v365 = vunpack.c.l.b16 %v288
    %v366 = vunpack.c.l.b16 %v302
    %v367 = vunpack.c.l.b16 %v312
    %v368 = vunpack.c.l.b16 %v326
    %v369 = vunpack.c.l.b16 %v336
    %v370 = vpack.c.b16 %v355, %v354
    %v371 = vpack.c.b16 %v357, %v356
    %v372 = vpack.c.b16 %v359, %v358
    %v373 = vpack.c.b16 %v361, %v360
    %v374 = vpack.c.b16 %v363, %v362
    %v375 = vpack.c.b16 %v365, %v364
    %v376 = vpack.c.b16 %v367, %v366
    %v377 = vpack.c.b16 %v369, %v368
    %v402 = vunpack.c.l.b16 %v338
    %v403 = vunpack.c.l.b16 %v339
    %v404 = vunpack.c.l.b16 %v340
    %v405 = vunpack.c.l.b16 %v341
    %v406 = vunpack.c.l.b16 %v342
    %v407 = vunpack.c.l.b16 %v343
    %v408 = vunpack.c.l.b16 %v344
    %v409 = vunpack.c.l.b16 %v345
    %v410 = vunpack.c.l.b16 %v346
    %v411 = vunpack.c.l.b16 %v347
    %v412 = vunpack.c.l.b16 %v348
    %v413 = vunpack.c.l.b16 %v349
    %v414 = vunpack.c.l.b16 %v350
    %v415 = vunpack.c.l.b16 %v351
    %v416 = vunpack.c.l.b16 %v352
    %v417 = vunpack.c.l.b16 %v353
    %v418 = vpack.c.b16 %v403, %v402
    %v419 = vpack.c.b16 %v405, %v404
    %v420 = vpack.c.b16 %v407, %v406
    %v421 = vpack.c.b16 %v409, %v408
    %v422 = vpack.c.b16 %v411, %v410
    %v423 = vpack.c.b16 %v413, %v412
    %v424 = vpack.c.b16 %v415, %v414
    %v425 = vpack.c.b16 %v417, %v416
    %434 = vmatprep.subr.bf16.mxu0 0
    %435 = vmatpush1.bf16.msra.mxu0 %v418
    %436 = vmatprep.subr.bf16.mxu0 0
    %437 = vmatpush1.bf16.msra.mxu0 %v419
    %438 = vmatprep.subr.bf16.mxu0 0
    %439 = vmatpush1.bf16.msra.mxu0 %v420
    %440 = vmatprep.subr.bf16.mxu0 0
    %441 = vmatpush1.bf16.msra.mxu0 %v421
    %442 = vmatprep.subr.bf16.mxu0 0
    %443 = vmatpush1.bf16.msra.mxu0 %v422
    %444 = vmatprep.subr.bf16.mxu0 0
    %445 = vmatpush1.bf16.msra.mxu0 %v423
    %446 = vmatprep.subr.bf16.mxu0 0
    %447 = vmatpush1.bf16.msra.mxu0 %v424
    %448 = vmatprep.subr.bf16.mxu0 0
    %449 = vmatpush1.bf16.msra.mxu0 %v425
    %450 = vmatprep.subr.bf16.mxu0 0
    %451 = vmatpush1.bf16.msra.mxu0 0
    %452 = vmatprep.subr.bf16.mxu0 0
    %453 = vmatpush1.bf16.msra.mxu0 0
    %454 = vmatprep.subr.bf16.mxu0 0
    %455 = vmatpush1.bf16.msra.mxu0 0
    %456 = vmatprep.subr.bf16.mxu0 0
    %457 = vmatpush1.bf16.msra.mxu0 0
    %458 = vmatprep.subr.bf16.mxu0 0
    %459 = vmatpush1.bf16.msra.mxu0 0
    %460 = vmatprep.subr.bf16.mxu0 0
    %461 = vmatpush1.bf16.msra.mxu0 0
    %462 = vmatprep.subr.bf16.mxu0 0
    %463 = vmatpush1.bf16.msra.mxu0 0
    %464 = vmatprep.subr.bf16.mxu0 0
    %465 = vmatpush1.bf16.msra.mxu0 0
    %466 = vmatprep.mubr.bf16.mxu0 0
    %467 = vmatmul.mubr.bf16.gmra.mrb[0].mxu0 %v370
    %v468 = vpop.f32.mrb[0].mxu0
    %v469 = vadd.f32 0.0, %v468
    %v470 = vpop.f32.mrb[0].mxu0
    %v471 = vpop.f32.mrb[0].mxu0
    %v472 = vadd.f32 0.0, %v471
    %v473 = vpop.f32.mrb[0].mxu0
    %474 = vmatprep.mubr.bf16.mxu0 0
    %475 = vmatmul.mubr.bf16.gmra.mrb[0].mxu0 %v371
    %v476 = vpop.f32.mrb[0].mxu0
    %v477 = vadd.f32 0.0, %v476
    %v478 = vpop.f32.mrb[0].mxu0
    %v479 = vpop.f32.mrb[0].mxu0
    %v480 = vadd.f32 0.0, %v479
    %v481 = vpop.f32.mrb[0].mxu0
    %482 = vmatprep.mubr.bf16.mxu0 0
    %483 = vmatmul.mubr.bf16.gmra.mrb[0].mxu0 %v372
    %v484 = vpop.f32.mrb[0].mxu0
    %v485 = vadd.f32 0.0, %v484
    %v486 = vpop.f32.mrb[0].mxu0
    %v487 = vpop.f32.mrb[0].mxu0
    %v488 = vadd.f32 0.0, %v487
    %v489 = vpop.f32.mrb[0].mxu0
    %490 = vmatprep.mubr.bf16.mxu0 0
    %491 = vmatmul.mubr.bf16.gmra.mrb[0].mxu0 %v373
    %v492 = vpop.f32.mrb[0].mxu0
    %v493 = vadd.f32 0.0, %v492
    %v494 = vpop.f32.mrb[0].mxu0
    %v495 = vpop.f32.mrb[0].mxu0
    %v496 = vadd.f32 0.0, %v495
    %v497 = vpop.f32.mrb[0].mxu0
    %498 = vmatprep.mubr.bf16.mxu0 0
    %499 = vmatmul.mubr.bf16.gmra.mrb[0].mxu0 %v374
    %v500 = vpop.f32.mrb[0].mxu0
    %v501 = vadd.f32 0.0, %v500
    %v502 = vpop.f32.mrb[0].mxu0
    %v503 = vpop.f32.mrb[0].mxu0
    %v504 = vadd.f32 0.0, %v503
    %v505 = vpop.f32.mrb[0].mxu0
    %506 = vmatprep.mubr.bf16.mxu0 0
    %507 = vmatmul.mubr.bf16.gmra.mrb[0].mxu0 %v375
    %v508 = vpop.f32.mrb[0].mxu0
    %v509 = vadd.f32 0.0, %v508
    %v510 = vpop.f32.mrb[0].mxu0
    %v511 = vpop.f32.mrb[0].mxu0
    %v512 = vadd.f32 0.0, %v511
    %v513 = vpop.f32.mrb[0].mxu0
    %514 = vmatprep.mubr.bf16.mxu0 0
    %515 = vmatmul.mubr.bf16.gmra.mrb[0].mxu0 %v376
    %v516 = vpop.f32.mrb[0].mxu0
    %v517 = vadd.f32 0.0, %v516
    %v518 = vpop.f32.mrb[0].mxu0
    %v519 = vpop.f32.mrb[0].mxu0
    %v520 = vadd.f32 0.0, %v519
    %v521 = vpop.f32.mrb[0].mxu0
    %522 = vmatprep.mubr.bf16.mxu0 0
    %523 = vmatmul.mubr.bf16.gmra.mrb[0].mxu0 %v377
    %v524 = vpop.f32.mrb[0].mxu0
    %v525 = vadd.f32 0.0, %v524
    %v526 = vpop.f32.mrb[0].mxu0
    %v527 = vpop.f32.mrb[0].mxu0
    %v528 = vadd.f32 0.0, %v527
    %v529 = vpop.f32.mrb[0].mxu0
    %530 = vdwg.mxu0
    %v547 = vunpack.c.l.b16 %v86
    %v548 = vunpack.c.l.b16 %v87
    %v549 = vunpack.c.l.b16 %v88
    %v550 = vunpack.c.l.b16 %v89
    %v551 = vunpack.c.l.b16 %v90
    %v552 = vunpack.c.l.b16 %v91
    %v553 = vunpack.c.l.b16 %v92
    %v554 = vunpack.c.l.b16 %v93
    %v555 = vunpack.c.l.b16 %v94
    %v556 = vunpack.c.l.b16 %v95
    %v557 = vunpack.c.l.b16 %v96
    %v558 = vunpack.c.l.b16 %v97
    %v559 = vunpack.c.l.b16 %v98
    %v560 = vunpack.c.l.b16 %v99
    %v561 = vunpack.c.l.b16 %v100
    %v562 = vunpack.c.l.b16 %v101
    %v563 = vpack.c.b16 %v548, %v547
    %v564 = vpack.c.b16 %v550, %v549
    %v565 = vpack.c.b16 %v552, %v551
    %v566 = vpack.c.b16 %v554, %v553
    %v567 = vpack.c.b16 %v556, %v555
    %v568 = vpack.c.b16 %v558, %v557
    %v569 = vpack.c.b16 %v560, %v559
    %v570 = vpack.c.b16 %v562, %v561
    %v595 = vunpack.c.l.b16 %v102
    %v596 = vunpack.c.l.b16 %v103
    %v597 = vunpack.c.l.b16 %v104
    %v598 = vunpack.c.l.b16 %v105
    %v599 = vunpack.c.l.b16 %v106
    %v600 = vunpack.c.l.b16 %v107
    %v601 = vunpack.c.l.b16 %v108
    %v602 = vunpack.c.l.b16 %v109
    %v603 = vunpack.c.l.b16 %v110
    %v604 = vunpack.c.l.b16 %v111
    %v605 = vunpack.c.l.b16 %v112
    %v606 = vunpack.c.l.b16 %v113
    %v607 = vunpack.c.l.b16 %v114
    %v608 = vunpack.c.l.b16 %v115
    %v609 = vunpack.c.l.b16 %v116
    %v610 = vunpack.c.l.b16 %v117
    %v611 = vpack.c.b16 %v596, %v595
    %v612 = vpack.c.b16 %v598, %v597
    %v613 = vpack.c.b16 %v600, %v599
    %v614 = vpack.c.b16 %v602, %v601
    %v615 = vpack.c.b16 %v604, %v603
    %v616 = vpack.c.b16 %v606, %v605
    %v617 = vpack.c.b16 %v608, %v607
    %v618 = vpack.c.b16 %v610, %v609
    %627 = vmatprep.subr.bf16.mxu0 0
    %628 = vmatpush1.bf16.msra.mxu0 %v611
    %629 = vmatprep.subr.bf16.mxu0 0
    %630 = vmatpush1.bf16.msra.mxu0 %v612
    %631 = vmatprep.subr.bf16.mxu0 0
    %632 = vmatpush1.bf16.msra.mxu0 %v613
    %633 = vmatprep.subr.bf16.mxu0 0
    %634 = vmatpush1.bf16.msra.mxu0 %v614
    %635 = vmatprep.subr.bf16.mxu0 0
    %636 = vmatpush1.bf16.msra.mxu0 %v615
    %637 = vmatprep.subr.bf16.mxu0 0
    %638 = vmatpush1.bf16.msra.mxu0 %v616
    %639 = vmatprep.subr.bf16.mxu0 0
    %640 = vmatpush1.bf16.msra.mxu0 %v617
    %641 = vmatprep.subr.bf16.mxu0 0
    %642 = vmatpush1.bf16.msra.mxu0 %v618
    %643 = vmatprep.subr.bf16.mxu0 0
    %644 = vmatpush1.bf16.msra.mxu0 0
    %645 = vmatprep.subr.bf16.mxu0 0
    %646 = vmatpush1.bf16.msra.mxu0 0
    %647 = vmatprep.subr.bf16.mxu0 0
    %648 = vmatpush1.bf16.msra.mxu0 0
    %649 = vmatprep.subr.bf16.mxu0 0
    %650 = vmatpush1.bf16.msra.mxu0 0
    %651 = vmatprep.subr.bf16.mxu0 0
    %652 = vmatpush1.bf16.msra.mxu0 0
    %653 = vmatprep.subr.bf16.mxu0 0
    %654 = vmatpush1.bf16.msra.mxu0 0
    %655 = vmatprep.subr.bf16.mxu0 0
    %656 = vmatpush1.bf16.msra.mxu0 0
    %657 = vmatprep.subr.bf16.mxu0 0
    %658 = vmatpush1.bf16.msra.mxu0 0
    %659 = vmatprep.mubr.bf16.mxu0 0
    %660 = vmatmul.mubr.bf16.gmra.mrb[0].mxu0 %v563
    %v661 = vpop.f32.mrb[0].mxu0
    %v662 = vadd.f32 %v469, %v661
    %v663 = vpop.f32.mrb[0].mxu0
    %v664 = vpop.f32.mrb[0].mxu0
    %v665 = vadd.f32 %v472, %v664
    %v666 = vpop.f32.mrb[0].mxu0
    %667 = vmatprep.mubr.bf16.mxu0 0
    %668 = vmatmul.mubr.bf16.gmra.mrb[0].mxu0 %v564
    %v669 = vpop.f32.mrb[0].mxu0
    %v670 = vadd.f32 %v477, %v669
    %v671 = vpop.f32.mrb[0].mxu0
    %v672 = vpop.f32.mrb[0].mxu0
    %v673 = vadd.f32 %v480, %v672
    %v674 = vpop.f32.mrb[0].mxu0
    %675 = vmatprep.mubr.bf16.mxu0 0
    %676 = vmatmul.mubr.bf16.gmra.mrb[0].mxu0 %v565
    %v677 = vpop.f32.mrb[0].mxu0
    %v678 = vadd.f32 %v485, %v677
    %v679 = vpop.f32.mrb[0].mxu0
    %v680 = vpop.f32.mrb[0].mxu0
    %v681 = vadd.f32 %v488, %v680
    %v682 = vpop.f32.mrb[0].mxu0
    %683 = vmatprep.mubr.bf16.mxu0 0
    %684 = vmatmul.mubr.bf16.gmra.mrb[0].mxu0 %v566
    %v685 = vpop.f32.mrb[0].mxu0
    %v686 = vadd.f32 %v493, %v685
    %v687 = vpop.f32.mrb[0].mxu0
    %v688 = vpop.f32.mrb[0].mxu0
    %v689 = vadd.f32 %v496, %v688
    %v690 = vpop.f32.mrb[0].mxu0
    %691 = vmatprep.mubr.bf16.mxu0 0
    %692 = vmatmul.mubr.bf16.gmra.mrb[0].mxu0 %v567
    %v693 = vpop.f32.mrb[0].mxu0
    %v694 = vadd.f32 %v501, %v693
    %v695 = vpop.f32.mrb[0].mxu0
    %v696 = vpop.f32.mrb[0].mxu0
    %v697 = vadd.f32 %v504, %v696
    %v698 = vpop.f32.mrb[0].mxu0
    %699 = vmatprep.mubr.bf16.mxu0 0
    %700 = vmatmul.mubr.bf16.gmra.mrb[0].mxu0 %v568
    %v701 = vpop.f32.mrb[0].mxu0
    %v702 = vadd.f32 %v509, %v701
    %v703 = vpop.f32.mrb[0].mxu0
    %v704 = vpop.f32.mrb[0].mxu0
    %v705 = vadd.f32 %v512, %v704
    %v706 = vpop.f32.mrb[0].mxu0
    %707 = vmatprep.mubr.bf16.mxu0 0
    %708 = vmatmul.mubr.bf16.gmra.mrb[0].mxu0 %v569
    %v709 = vpop.f32.mrb[0].mxu0
    %v710 = vadd.f32 %v517, %v709
    %v711 = vpop.f32.mrb[0].mxu0
    %v712 = vpop.f32.mrb[0].mxu0
    %v713 = vadd.f32 %v520, %v712
    %v714 = vpop.f32.mrb[0].mxu0
    %715 = vmatprep.mubr.bf16.mxu0 0
    %716 = vmatmul.mubr.bf16.gmra.mrb[0].mxu0 %v570
    %v717 = vpop.f32.mrb[0].mxu0
    %v718 = vadd.f32 %v525, %v717
    %v719 = vpop.f32.mrb[0].mxu0
    %v720 = vpop.f32.mrb[0].mxu0
    %v721 = vadd.f32 %v528, %v720
    %v722 = vpop.f32.mrb[0].mxu0
    %723 = vdwg.mxu0
    %v724 = vld [vmem:[#allocation2] sm:$0xe]
    %v725 = vld [vmem:[#allocation2 + $0xc] sm:$0xe]
    %v726 = vld [vmem:[#allocation2 + $0x18] sm:$0xe]
    %v727 = vld [vmem:[#allocation2 + $0x24] sm:$0xe]
    %v728 = vld [vmem:[#allocation2 + $0x30] sm:$0xe]
    %v729 = vld [vmem:[#allocation2 + $0x3c] sm:$0xe]
    %v730 = vld [vmem:[#allocation2 + $0x48] sm:$0xe]
    %v731 = vld [vmem:[#allocation2 + $0x54] sm:$0xe]
    %vm756 = vcmask 1042432
    %vm757 = vcmask 1046532
    %vm758 = vmor %vm756, %vm757
    %v759 = vrot.slane %v724, 5
    %v760 = vrot.slane %v759, 4
    %v761 = vrot.slane %v119, 5
    %v762 = vsel %vm758, %v760, %v761
    %v763 = vrot.slane %v761, 4
    %v764 = vrot.slane %v120, 5
    %v765 = vsel %vm758, %v763, %v764
    %v766 = vrot.slane %v725, 5
    %v767 = vrot.slane %v766, 4
    %v768 = vrot.slane %v122, 5
    %v769 = vsel %vm758, %v767, %v768
    %v770 = vrot.slane %v768, 4
    %v771 = vrot.slane %v123, 5
    %v772 = vsel %vm758, %v770, %v771
    %v773 = vrot.slane %v726, 5
    %v774 = vrot.slane %v773, 4
    %v775 = vrot.slane %v125, 5
    %v776 = vsel %vm758, %v774, %v775
    %v777 = vrot.slane %v775, 4
    %v778 = vrot.slane %v126, 5
    %v779 = vsel %vm758, %v777, %v778
    %v780 = vrot.slane %v727, 5
    %v781 = vrot.slane %v780, 4
    %v782 = vrot.slane %v128, 5
    %v783 = vsel %vm758, %v781, %v782
    %v784 = vrot.slane %v782, 4
    %v785 = vrot.slane %v129, 5
    %v786 = vsel %vm758, %v784, %v785
    %v787 = vrot.slane %v728, 5
    %v788 = vrot.slane %v787, 4
    %v789 = vrot.slane %v131, 5
    %v790 = vsel %vm758, %v788, %v789
    %v791 = vrot.slane %v789, 4
    %v792 = vrot.slane %v132, 5
    %v793 = vsel %vm758, %v791, %v792
    %v794 = vrot.slane %v729, 5
    %v795 = vrot.slane %v794, 4
    %v796 = vrot.slane %v134, 5
    %v797 = vsel %vm758, %v795, %v796
    %v798 = vrot.slane %v796, 4
    %v799 = vrot.slane %v135, 5
    %v800 = vsel %vm758, %v798, %v799
    %v801 = vrot.slane %v730, 5
    %v802 = vrot.slane %v801, 4
    %v803 = vrot.slane %v137, 5
    %v804 = vsel %vm758, %v802, %v803
    %v805 = vrot.slane %v803, 4
    %v806 = vrot.slane %v138, 5
    %v807 = vsel %vm758, %v805, %v806
    %v808 = vrot.slane %v731, 5
    %v809 = vrot.slane %v808, 4
    %v810 = vrot.slane %v140, 5
    %v811 = vsel %vm758, %v809, %v810
    %v812 = vrot.slane %v810, 4
    %v813 = vrot.slane %v141, 5
    %v814 = vsel %vm758, %v812, %v813
    %s815 = scalar_lea.vmem [#allocation5], 128
    %v816 = vld [vmem:[%s815] sm:$0xf]
    %v817 = vld [vmem:[%s815 + $0x4] sm:$0xf]
    %v818 = vld [vmem:[%s815 + $0x8] sm:$0xf]
    %v819 = vld [vmem:[%s815 + $0xc] sm:$0xf]
    %v820 = vld [vmem:[%s815 + $0x10] sm:$0xf]
    %v821 = vld [vmem:[%s815 + $0x14] sm:$0xf]
    %v822 = vld [vmem:[%s815 + $0x18] sm:$0xf]
    %v823 = vld [vmem:[%s815 + $0x1c] sm:$0xf]
    %v824 = vld [vmem:[%s815 + $0x20] sm:$0xf]
    %v825 = vld [vmem:[%s815 + $0x24] sm:$0xf]
    %v826 = vld [vmem:[%s815 + $0x28] sm:$0xf]
    %v827 = vld [vmem:[%s815 + $0x2c] sm:$0xf]
    %v828 = vld [vmem:[%s815 + $0x30] sm:$0xf]
    %v829 = vld [vmem:[%s815 + $0x34] sm:$0xf]
    %v830 = vld [vmem:[%s815 + $0x38] sm:$0xf]
    %v831 = vld [vmem:[%s815 + $0x3c] sm:$0xf]
    %v832 = vunpack.c.l.b16 %v762
    %v833 = vunpack.c.l.b16 %v765
    %v834 = vunpack.c.l.b16 %v769
    %v835 = vunpack.c.l.b16 %v772
    %v836 = vunpack.c.l.b16 %v776
    %v837 = vunpack.c.l.b16 %v779
    %v838 = vunpack.c.l.b16 %v783
    %v839 = vunpack.c.l.b16 %v786
    %v840 = vunpack.c.l.b16 %v790
    %v841 = vunpack.c.l.b16 %v793
    %v842 = vunpack.c.l.b16 %v797
    %v843 = vunpack.c.l.b16 %v800
    %v844 = vunpack.c.l.b16 %v804
    %v845 = vunpack.c.l.b16 %v807
    %v846 = vunpack.c.l.b16 %v811
    %v847 = vunpack.c.l.b16 %v814
    %v848 = vpack.c.b16 %v833, %v832
    %v849 = vpack.c.b16 %v835, %v834
    %v850 = vpack.c.b16 %v837, %v836
    %v851 = vpack.c.b16 %v839, %v838
    %v852 = vpack.c.b16 %v841, %v840
    %v853 = vpack.c.b16 %v843, %v842
    %v854 = vpack.c.b16 %v845, %v844
    %v855 = vpack.c.b16 %v847, %v846
    %v880 = vunpack.c.l.b16 %v816
    %v881 = vunpack.c.l.b16 %v817
    %v882 = vunpack.c.l.b16 %v818
    %v883 = vunpack.c.l.b16 %v819
    %v884 = vunpack.c.l.b16 %v820
    %v885 = vunpack.c.l.b16 %v821
    %v886 = vunpack.c.l.b16 %v822
    %v887 = vunpack.c.l.b16 %v823
    %v888 = vunpack.c.l.b16 %v824
    %v889 = vunpack.c.l.b16 %v825
    %v890 = vunpack.c.l.b16 %v826
    %v891 = vunpack.c.l.b16 %v827
    %v892 = vunpack.c.l.b16 %v828
    %v893 = vunpack.c.l.b16 %v829
    %v894 = vunpack.c.l.b16 %v830
    %v895 = vunpack.c.l.b16 %v831
    %v896 = vpack.c.b16 %v881, %v880
    %v897 = vpack.c.b16 %v883, %v882
    %v898 = vpack.c.b16 %v885, %v884
    %v899 = vpack.c.b16 %v887, %v886
    %v900 = vpack.c.b16 %v889, %v888
    %v901 = vpack.c.b16 %v891, %v890
    %v902 = vpack.c.b16 %v893, %v892
    %v903 = vpack.c.b16 %v895, %v894
    %912 = vmatprep.subr.bf16.mxu0 0
    %913 = vmatpush1.bf16.msra.mxu0 %v896
    %914 = vmatprep.subr.bf16.mxu0 0
    %915 = vmatpush1.bf16.msra.mxu0 %v897
    %916 = vmatprep.subr.bf16.mxu0 0
    %917 = vmatpush1.bf16.msra.mxu0 %v898
    %918 = vmatprep.subr.bf16.mxu0 0
    %919 = vmatpush1.bf16.msra.mxu0 %v899
    %920 = vmatprep.subr.bf16.mxu0 0
    %921 = vmatpush1.bf16.msra.mxu0 %v900
    %922 = vmatprep.subr.bf16.mxu0 0
    %923 = vmatpush1.bf16.msra.mxu0 %v901
    %924 = vmatprep.subr.bf16.mxu0 0
    %925 = vmatpush1.bf16.msra.mxu0 %v902
    %926 = vmatprep.subr.bf16.mxu0 0
    %927 = vmatpush1.bf16.msra.mxu0 %v903
    %928 = vmatprep.subr.bf16.mxu0 0
    %929 = vmatpush1.bf16.msra.mxu0 0
    %930 = vmatprep.subr.bf16.mxu0 0
    %931 = vmatpush1.bf16.msra.mxu0 0
    %932 = vmatprep.subr.bf16.mxu0 0
    %933 = vmatpush1.bf16.msra.mxu0 0
    %934 = vmatprep.subr.bf16.mxu0 0
    %935 = vmatpush1.bf16.msra.mxu0 0
    %936 = vmatprep.subr.bf16.mxu0 0
    %937 = vmatpush1.bf16.msra.mxu0 0
    %938 = vmatprep.subr.bf16.mxu0 0
    %939 = vmatpush1.bf16.msra.mxu0 0
    %940 = vmatprep.subr.bf16.mxu0 0
    %941 = vmatpush1.bf16.msra.mxu0 0
    %942 = vmatprep.subr.bf16.mxu0 0
    %943 = vmatpush1.bf16.msra.mxu0 0
    %944 = vmatprep.mubr.bf16.mxu0 0
    %945 = vmatmul.mubr.bf16.gmra.mrb[0].mxu0 %v848
    %v946 = vpop.f32.mrb[0].mxu0
    %v947 = vadd.f32 0.0, %v946
    %v948 = vpop.f32.mrb[0].mxu0
    %v949 = vpop.f32.mrb[0].mxu0
    %v950 = vadd.f32 0.0, %v949
    %v951 = vpop.f32.mrb[0].mxu0
    %952 = vmatprep.mubr.bf16.mxu0 0
    %953 = vmatmul.mubr.bf16.gmra.mrb[0].mxu0 %v849
    %v954 = vpop.f32.mrb[0].mxu0
    %v955 = vadd.f32 0.0, %v954
    %v956 = vpop.f32.mrb[0].mxu0
    %v957 = vpop.f32.mrb[0].mxu0
    %v958 = vadd.f32 0.0, %v957
    %v959 = vpop.f32.mrb[0].mxu0
    %960 = vmatprep.mubr.bf16.mxu0 0
    %961 = vmatmul.mubr.bf16.gmra.mrb[0].mxu0 %v850
    %v962 = vpop.f32.mrb[0].mxu0
    %v963 = vadd.f32 0.0, %v962
    %v964 = vpop.f32.mrb[0].mxu0
    %v965 = vpop.f32.mrb[0].mxu0
    %v966 = vadd.f32 0.0, %v965
    %v967 = vpop.f32.mrb[0].mxu0
    %968 = vmatprep.mubr.bf16.mxu0 0
    %969 = vmatmul.mubr.bf16.gmra.mrb[0].mxu0 %v851
    %v970 = vpop.f32.mrb[0].mxu0
    %v971 = vadd.f32 0.0, %v970
    %v972 = vpop.f32.mrb[0].mxu0
    %v973 = vpop.f32.mrb[0].mxu0
    %v974 = vadd.f32 0.0, %v973
    %v975 = vpop.f32.mrb[0].mxu0
    %976 = vmatprep.mubr.bf16.mxu0 0
    %977 = vmatmul.mubr.bf16.gmra.mrb[0].mxu0 %v852
    %v978 = vpop.f32.mrb[0].mxu0
    %v979 = vadd.f32 0.0, %v978
    %v980 = vpop.f32.mrb[0].mxu0
    %v981 = vpop.f32.mrb[0].mxu0
    %v982 = vadd.f32 0.0, %v981
    %v983 = vpop.f32.mrb[0].mxu0
    %984 = vmatprep.mubr.bf16.mxu0 0
    %985 = vmatmul.mubr.bf16.gmra.mrb[0].mxu0 %v853
    %v986 = vpop.f32.mrb[0].mxu0
    %v987 = vadd.f32 0.0, %v986
    %v988 = vpop.f32.mrb[0].mxu0
    %v989 = vpop.f32.mrb[0].mxu0
    %v990 = vadd.f32 0.0, %v989
    %v991 = vpop.f32.mrb[0].mxu0
    %992 = vmatprep.mubr.bf16.mxu0 0
    %993 = vmatmul.mubr.bf16.gmra.mrb[0].mxu0 %v854
    %v994 = vpop.f32.mrb[0].mxu0
    %v995 = vadd.f32 0.0, %v994
    %v996 = vpop.f32.mrb[0].mxu0
    %v997 = vpop.f32.mrb[0].mxu0
    %v998 = vadd.f32 0.0, %v997
    %v999 = vpop.f32.mrb[0].mxu0
    %1000 = vmatprep.mubr.bf16.mxu0 0
    %1001 = vmatmul.mubr.bf16.gmra.mrb[0].mxu0 %v855
    %v1002 = vpop.f32.mrb[0].mxu0
    %v1003 = vadd.f32 0.0, %v1002
    %v1004 = vpop.f32.mrb[0].mxu0
    %v1005 = vpop.f32.mrb[0].mxu0
    %v1006 = vadd.f32 0.0, %v1005
    %v1007 = vpop.f32.mrb[0].mxu0
    %1008 = vdwg.mxu0
    %v1009 = vadd.f32 %v662, %v947
    %v1010 = vadd.f32 %v665, %v950
    %v1011 = vadd.f32 %v670, %v955
    %v1012 = vadd.f32 %v673, %v958
    %v1013 = vadd.f32 %v678, %v963
    %v1014 = vadd.f32 %v681, %v966
    %v1015 = vadd.f32 %v686, %v971
    %v1016 = vadd.f32 %v689, %v974
    %v1017 = vadd.f32 %v694, %v979
    %v1018 = vadd.f32 %v697, %v982
    %v1019 = vadd.f32 %v702, %v987
    %v1020 = vadd.f32 %v705, %v990
    %v1021 = vadd.f32 %v710, %v995
    %v1022 = vadd.f32 %v713, %v998
    %v1023 = vadd.f32 %v718, %v1003
    %v1024 = vadd.f32 %v721, %v1006
    %v1025 = vld [vmem:[#allocation2 + $0x8] sm:$0x3]
    %v1026 = vld [vmem:[#allocation2 + $0x14] sm:$0x3]
    %v1027 = vld [vmem:[#allocation2 + $0x20] sm:$0x3]
    %v1028 = vld [vmem:[#allocation2 + $0x2c] sm:$0x3]
    %v1029 = vld [vmem:[#allocation2 + $0x38] sm:$0x3]
    %v1030 = vld [vmem:[#allocation2 + $0x44] sm:$0x3]
    %v1031 = vld [vmem:[#allocation2 + $0x50] sm:$0x3]
    %v1032 = vld [vmem:[#allocation2 + $0x5c] sm:$0x3]
    %vm1033 = vsmask.f32 2304
    %vm1034 = vsmask.f32 6416
    %vm1035 = vmor %vm1033, %vm1034
    %v1037 = vshrl.u32 %v724, 16
    %v1039 = vrot.slane %v1037, 5
    %v1040 = vshll.u32 %v724, 16
    %v1042 = vrot.slane %v1040, 6
    %v1043 = vor.u32 %v1039, %v1042
    %v1044 = vrot.slane %v1043, 4
    %v1045 = vrot.slane %v159, 5
    %v1046 = vrot.slane %v155, 6
    %v1047 = vor.u32 %v1045, %v1046
    %v1048 = vsel %vm1035, %v1044, %v1047
    %v1049 = vrot.slane %v1047, 4
    %v1051 = vshrl.u32 %v1025, 16
    %v1053 = vrot.slane %v1051, 5
    %v1054 = vshll.u32 %v1025, 16
    %v1056 = vrot.slane %v1054, 6
    %v1057 = vor.u32 %v1053, %v1056
    %v1058 = vsel %vm1035, %v1049, %v1057
    %v1060 = vshrl.u32 %v725, 16
    %v1062 = vrot.slane %v1060, 5
    %v1063 = vshll.u32 %v725, 16
    %v1065 = vrot.slane %v1063, 6
    %v1066 = vor.u32 %v1062, %v1065
    %v1067 = vrot.slane %v1066, 4
    %v1068 = vrot.slane %v183, 5
    %v1069 = vrot.slane %v179, 6
    %v1070 = vor.u32 %v1068, %v1069
    %v1071 = vsel %vm1035, %v1067, %v1070
    %v1072 = vrot.slane %v1070, 4
    %v1074 = vshrl.u32 %v1026, 16
    %v1076 = vrot.slane %v1074, 5
    %v1077 = vshll.u32 %v1026, 16
    %v1079 = vrot.slane %v1077, 6
    %v1080 = vor.u32 %v1076, %v1079
    %v1081 = vsel %vm1035, %v1072, %v1080
    %v1083 = vshrl.u32 %v726, 16
    %v1085 = vrot.slane %v1083, 5
    %v1086 = vshll.u32 %v726, 16
    %v1088 = vrot.slane %v1086, 6
    %v1089 = vor.u32 %v1085, %v1088
    %v1090 = vrot.slane %v1089, 4
    %v1091 = vrot.slane %v207, 5
    %v1092 = vrot.slane %v203, 6
    %v1093 = vor.u32 %v1091, %v1092
    %v1094 = vsel %vm1035, %v1090, %v1093
    %v1095 = vrot.slane %v1093, 4
    %v1097 = vshrl.u32 %v1027, 16
    %v1099 = vrot.slane %v1097, 5
    %v1100 = vshll.u32 %v1027, 16
    %v1102 = vrot.slane %v1100, 6
    %v1103 = vor.u32 %v1099, %v1102
    %v1104 = vsel %vm1035, %v1095, %v1103
    %v1106 = vshrl.u32 %v727, 16
    %v1108 = vrot.slane %v1106, 5
    %v1109 = vshll.u32 %v727, 16
    %v1111 = vrot.slane %v1109, 6
    %v1112 = vor.u32 %v1108, %v1111
    %v1113 = vrot.slane %v1112, 4
    %v1114 = vrot.slane %v231, 5
    %v1115 = vrot.slane %v227, 6
    %v1116 = vor.u32 %v1114, %v1115
    %v1117 = vsel %vm1035, %v1113, %v1116
    %v1118 = vrot.slane %v1116, 4
    %v1120 = vshrl.u32 %v1028, 16
    %v1122 = vrot.slane %v1120, 5
    %v1123 = vshll.u32 %v1028, 16
    %v1125 = vrot.slane %v1123, 6
    %v1126 = vor.u32 %v1122, %v1125
    %v1127 = vsel %vm1035, %v1118, %v1126
    %v1129 = vshrl.u32 %v728, 16
    %v1131 = vrot.slane %v1129, 5
    %v1132 = vshll.u32 %v728, 16
    %v1134 = vrot.slane %v1132, 6
    %v1135 = vor.u32 %v1131, %v1134
    %v1136 = vrot.slane %v1135, 4
    %v1137 = vrot.slane %v255, 5
    %v1138 = vrot.slane %v251, 6
    %v1139 = vor.u32 %v1137, %v1138
    %v1140 = vsel %vm1035, %v1136, %v1139
    %v1141 = vrot.slane %v1139, 4
    %v1143 = vshrl.u32 %v1029, 16
    %v1145 = vrot.slane %v1143, 5
    %v1146 = vshll.u32 %v1029, 16
    %v1148 = vrot.slane %v1146, 6
    %v1149 = vor.u32 %v1145, %v1148
    %v1150 = vsel %vm1035, %v1141, %v1149
    %v1152 = vshrl.u32 %v729, 16
    %v1154 = vrot.slane %v1152, 5
    %v1155 = vshll.u32 %v729, 16
    %v1157 = vrot.slane %v1155, 6
    %v1158 = vor.u32 %v1154, %v1157
    %v1159 = vrot.slane %v1158, 4
    %v1160 = vrot.slane %v279, 5
    %v1161 = vrot.slane %v275, 6
    %v1162 = vor.u32 %v1160, %v1161
    %v1163 = vsel %vm1035, %v1159, %v1162
    %v1164 = vrot.slane %v1162, 4
    %v1166 = vshrl.u32 %v1030, 16
    %v1168 = vrot.slane %v1166, 5
    %v1169 = vshll.u32 %v1030, 16
    %v1171 = vrot.slane %v1169, 6
    %v1172 = vor.u32 %v1168, %v1171
    %v1173 = vsel %vm1035, %v1164, %v1172
    %v1175 = vshrl.u32 %v730, 16
    %v1177 = vrot.slane %v1175, 5
    %v1178 = vshll.u32 %v730, 16
    %v1180 = vrot.slane %v1178, 6
    %v1181 = vor.u32 %v1177, %v1180
    %v1182 = vrot.slane %v1181, 4
    %v1183 = vrot.slane %v303, 5
    %v1184 = vrot.slane %v299, 6
    %v1185 = vor.u32 %v1183, %v1184
    %v1186 = vsel %vm1035, %v1182, %v1185
    %v1187 = vrot.slane %v1185, 4
    %v1189 = vshrl.u32 %v1031, 16
    %v1191 = vrot.slane %v1189, 5
    %v1192 = vshll.u32 %v1031, 16
    %v1194 = vrot.slane %v1192, 6
    %v1195 = vor.u32 %v1191, %v1194
    %v1196 = vsel %vm1035, %v1187, %v1195
    %v1198 = vshrl.u32 %v731, 16
    %v1200 = vrot.slane %v1198, 5
    %v1201 = vshll.u32 %v731, 16
    %v1203 = vrot.slane %v1201, 6
    %v1204 = vor.u32 %v1200, %v1203
    %v1205 = vrot.slane %v1204, 4
    %v1206 = vrot.slane %v327, 5
    %v1207 = vrot.slane %v323, 6
    %v1208 = vor.u32 %v1206, %v1207
    %v1209 = vsel %vm1035, %v1205, %v1208
    %v1210 = vrot.slane %v1208, 4
    %v1212 = vshrl.u32 %v1032, 16
    %v1214 = vrot.slane %v1212, 5
    %v1215 = vshll.u32 %v1032, 16
    %v1217 = vrot.slane %v1215, 6
    %v1218 = vor.u32 %v1214, %v1217
    %v1219 = vsel %vm1035, %v1210, %v1218
    %s1220 = scalar_lea.vmem [#allocation5], 192
    %v1221 = vld [vmem:[%s1220] sm:$0xf]
    %v1222 = vld [vmem:[%s1220 + $0x4] sm:$0xf]
    %v1223 = vld [vmem:[%s1220 + $0x8] sm:$0xf]
    %v1224 = vld [vmem:[%s1220 + $0xc] sm:$0xf]
    %v1225 = vld [vmem:[%s1220 + $0x10] sm:$0xf]
    %v1226 = vld [vmem:[%s1220 + $0x14] sm:$0xf]
    %v1227 = vld [vmem:[%s1220 + $0x18] sm:$0xf]
    %v1228 = vld [vmem:[%s1220 + $0x1c] sm:$0xf]
    %v1229 = vld [vmem:[%s1220 + $0x20] sm:$0xf]
    %v1230 = vld [vmem:[%s1220 + $0x24] sm:$0xf]
    %v1231 = vld [vmem:[%s1220 + $0x28] sm:$0xf]
    %v1232 = vld [vmem:[%s1220 + $0x2c] sm:$0xf]
    %v1233 = vld [vmem:[%s1220 + $0x30] sm:$0xf]
    %v1234 = vld [vmem:[%s1220 + $0x34] sm:$0xf]
    %v1235 = vld [vmem:[%s1220 + $0x38] sm:$0xf]
    %v1236 = vld [vmem:[%s1220 + $0x3c] sm:$0xf]
    %v1237 = vunpack.c.l.b16 %v1048
    %v1238 = vunpack.c.l.b16 %v1058
    %v1239 = vunpack.c.l.b16 %v1071
    %v1240 = vunpack.c.l.b16 %v1081
    %v1241 = vunpack.c.l.b16 %v1094
    %v1242 = vunpack.c.l.b16 %v1104
    %v1243 = vunpack.c.l.b16 %v1117
    %v1244 = vunpack.c.l.b16 %v1127
    %v1245 = vunpack.c.l.b16 %v1140
    %v1246 = vunpack.c.l.b16 %v1150
    %v1247 = vunpack.c.l.b16 %v1163
    %v1248 = vunpack.c.l.b16 %v1173
    %v1249 = vunpack.c.l.b16 %v1186
    %v1250 = vunpack.c.l.b16 %v1196
    %v1251 = vunpack.c.l.b16 %v1209
    %v1252 = vunpack.c.l.b16 %v1219
    %v1253 = vpack.c.b16 %v1238, %v1237
    %v1254 = vpack.c.b16 %v1240, %v1239
    %v1255 = vpack.c.b16 %v1242, %v1241
    %v1256 = vpack.c.b16 %v1244, %v1243
    %v1257 = vpack.c.b16 %v1246, %v1245
    %v1258 = vpack.c.b16 %v1248, %v1247
    %v1259 = vpack.c.b16 %v1250, %v1249
    %v1260 = vpack.c.b16 %v1252, %v1251
    %v1285 = vunpack.c.l.b16 %v1221
    %v1286 = vunpack.c.l.b16 %v1222
    %v1287 = vunpack.c.l.b16 %v1223
    %v1288 = vunpack.c.l.b16 %v1224
    %v1289 = vunpack.c.l.b16 %v1225
    %v1290 = vunpack.c.l.b16 %v1226
    %v1291 = vunpack.c.l.b16 %v1227
    %v1292 = vunpack.c.l.b16 %v1228
    %v1293 = vunpack.c.l.b16 %v1229
    %v1294 = vunpack.c.l.b16 %v1230
    %v1295 = vunpack.c.l.b16 %v1231
    %v1296 = vunpack.c.l.b16 %v1232
    %v1297 = vunpack.c.l.b16 %v1233
    %v1298 = vunpack.c.l.b16 %v1234
    %v1299 = vunpack.c.l.b16 %v1235
    %v1300 = vunpack.c.l.b16 %v1236
    %v1301 = vpack.c.b16 %v1286, %v1285
    %v1302 = vpack.c.b16 %v1288, %v1287
    %v1303 = vpack.c.b16 %v1290, %v1289
    %v1304 = vpack.c.b16 %v1292, %v1291
    %v1305 = vpack.c.b16 %v1294, %v1293
    %v1306 = vpack.c.b16 %v1296, %v1295
    %v1307 = vpack.c.b16 %v1298, %v1297
    %v1308 = vpack.c.b16 %v1300, %v1299
    %1317 = vmatprep.subr.bf16.mxu0 0
    %1318 = vmatpush1.bf16.msra.mxu0 %v1301
    %1319 = vmatprep.subr.bf16.mxu0 0
    %1320 = vmatpush1.bf16.msra.mxu0 %v1302
    %1321 = vmatprep.subr.bf16.mxu0 0
    %1322 = vmatpush1.bf16.msra.mxu0 %v1303
    %1323 = vmatprep.subr.bf16.mxu0 0
    %1324 = vmatpush1.bf16.msra.mxu0 %v1304
    %1325 = vmatprep.subr.bf16.mxu0 0
    %1326 = vmatpush1.bf16.msra.mxu0 %v1305
    %1327 = vmatprep.subr.bf16.mxu0 0
    %1328 = vmatpush1.bf16.msra.mxu0 %v1306
    %1329 = vmatprep.subr.bf16.mxu0 0
    %1330 = vmatpush1.bf16.msra.mxu0 %v1307
    %1331 = vmatprep.subr.bf16.mxu0 0
    %1332 = vmatpush1.bf16.msra.mxu0 %v1308
    %1333 = vmatprep.subr.bf16.mxu0 0
    %1334 = vmatpush1.bf16.msra.mxu0 0
    %1335 = vmatprep.subr.bf16.mxu0 0
    %1336 = vmatpush1.bf16.msra.mxu0 0
    %1337 = vmatprep.subr.bf16.mxu0 0
    %1338 = vmatpush1.bf16.msra.mxu0 0
    %1339 = vmatprep.subr.bf16.mxu0 0
    %1340 = vmatpush1.bf16.msra.mxu0 0
    %1341 = vmatprep.subr.bf16.mxu0 0
    %1342 = vmatpush1.bf16.msra.mxu0 0
    %1343 = vmatprep.subr.bf16.mxu0 0
    %1344 = vmatpush1.bf16.msra.mxu0 0
    %1345 = vmatprep.subr.bf16.mxu0 0
    %1346 = vmatpush1.bf16.msra.mxu0 0
    %1347 = vmatprep.subr.bf16.mxu0 0
    %1348 = vmatpush1.bf16.msra.mxu0 0
    %1349 = vmatprep.mubr.bf16.mxu0 0
    %1350 = vmatmul.mubr.bf16.gmra.mrb[0].mxu0 %v1253
    %v1351 = vpop.f32.mrb[0].mxu0
    %v1352 = vadd.f32 0.0, %v1351
    %v1353 = vpop.f32.mrb[0].mxu0
    %v1354 = vpop.f32.mrb[0].mxu0
    %v1355 = vadd.f32 0.0, %v1354
    %v1356 = vpop.f32.mrb[0].mxu0
    %1357 = vmatprep.mubr.bf16.mxu0 0
    %1358 = vmatmul.mubr.bf16.gmra.mrb[0].mxu0 %v1254
    %v1359 = vpop.f32.mrb[0].mxu0
    %v1360 = vadd.f32 0.0, %v1359
    %v1361 = vpop.f32.mrb[0].mxu0
    %v1362 = vpop.f32.mrb[0].mxu0
    %v1363 = vadd.f32 0.0, %v1362
    %v1364 = vpop.f32.mrb[0].mxu0
    %1365 = vmatprep.mubr.bf16.mxu0 0
    %1366 = vmatmul.mubr.bf16.gmra.mrb[0].mxu0 %v1255
    %v1367 = vpop.f32.mrb[0].mxu0
    %v1368 = vadd.f32 0.0, %v1367
    %v1369 = vpop.f32.mrb[0].mxu0
    %v1370 = vpop.f32.mrb[0].mxu0
    %v1371 = vadd.f32 0.0, %v1370
    %v1372 = vpop.f32.mrb[0].mxu0
    %1373 = vmatprep.mubr.bf16.mxu0 0
    %1374 = vmatmul.mubr.bf16.gmra.mrb[0].mxu0 %v1256
    %v1375 = vpop.f32.mrb[0].mxu0
    %v1376 = vadd.f32 0.0, %v1375
    %v1377 = vpop.f32.mrb[0].mxu0
    %v1378 = vpop.f32.mrb[0].mxu0
    %v1379 = vadd.f32 0.0, %v1378
    %v1380 = vpop.f32.mrb[0].mxu0
    %1381 = vmatprep.mubr.bf16.mxu0 0
    %1382 = vmatmul.mubr.bf16.gmra.mrb[0].mxu0 %v1257
    %v1383 = vpop.f32.mrb[0].mxu0
    %v1384 = vadd.f32 0.0, %v1383
    %v1385 = vpop.f32.mrb[0].mxu0
    %v1386 = vpop.f32.mrb[0].mxu0
    %v1387 = vadd.f32 0.0, %v1386
    %v1388 = vpop.f32.mrb[0].mxu0
    %1389 = vmatprep.mubr.bf16.mxu0 0
    %1390 = vmatmul.mubr.bf16.gmra.mrb[0].mxu0 %v1258
    %v1391 = vpop.f32.mrb[0].mxu0
    %v1392 = vadd.f32 0.0, %v1391
    %v1393 = vpop.f32.mrb[0].mxu0
    %v1394 = vpop.f32.mrb[0].mxu0
    %v1395 = vadd.f32 0.0, %v1394
    %v1396 = vpop.f32.mrb[0].mxu0
    %1397 = vmatprep.mubr.bf16.mxu0 0
    %1398 = vmatmul.mubr.bf16.gmra.mrb[0].mxu0 %v1259
    %v1399 = vpop.f32.mrb[0].mxu0
    %v1400 = vadd.f32 0.0, %v1399
    %v1401 = vpop.f32.mrb[0].mxu0
    %v1402 = vpop.f32.mrb[0].mxu0
    %v1403 = vadd.f32 0.0, %v1402
    %v1404 = vpop.f32.mrb[0].mxu0
    %1405 = vmatprep.mubr.bf16.mxu0 0
    %1406 = vmatmul.mubr.bf16.gmra.mrb[0].mxu0 %v1260
    %v1407 = vpop.f32.mrb[0].mxu0
    %v1408 = vadd.f32 0.0, %v1407
    %v1409 = vpop.f32.mrb[0].mxu0
    %v1410 = vpop.f32.mrb[0].mxu0
    %v1411 = vadd.f32 0.0, %v1410
    %v1412 = vpop.f32.mrb[0].mxu0
    %1413 = vdwg.mxu0
    %v1414 = vadd.f32 %v1009, %v1352
    %v1415 = vadd.f32 %v1010, %v1355
    %v1416 = vadd.f32 %v1011, %v1360
    %v1417 = vadd.f32 %v1012, %v1363
    %v1418 = vadd.f32 %v1013, %v1368
    %v1419 = vadd.f32 %v1014, %v1371
    %v1420 = vadd.f32 %v1015, %v1376
    %v1421 = vadd.f32 %v1016, %v1379
    %v1422 = vadd.f32 %v1017, %v1384
    %v1423 = vadd.f32 %v1018, %v1387
    %v1424 = vadd.f32 %v1019, %v1392
    %v1425 = vadd.f32 %v1020, %v1395
    %v1426 = vadd.f32 %v1021, %v1400
    %v1427 = vadd.f32 %v1022, %v1403
    %v1428 = vadd.f32 %v1023, %v1408
    %v1429 = vadd.f32 %v1024, %v1411
    %v1430 = vld [vmem:[#allocation2] sm:$0xc]
    %v1431 = vld [vmem:[#allocation2 + $0xc] sm:$0xc]
    %v1432 = vld [vmem:[#allocation2 + $0x18] sm:$0xc]
    %v1433 = vld [vmem:[#allocation2 + $0x24] sm:$0xc]
    %v1434 = vld [vmem:[#allocation2 + $0x30] sm:$0xc]
    %v1435 = vld [vmem:[#allocation2 + $0x3c] sm:$0xc]
    %v1436 = vld [vmem:[#allocation2 + $0x48] sm:$0xc]
    %v1437 = vld [vmem:[#allocation2 + $0x54] sm:$0xc]
    %vm1454 = vcmask 1041408
    %vm1455 = vcmask 1045508
    %vm1456 = vmor %vm1454, %vm1455
    %v1457 = vrot.slane %v1430, 6
    %v1458 = vrot.slane %v1457, 4
    %v1459 = vrot.slane %v119, 6
    %v1460 = vsel %vm1456, %v1458, %v1459
    %v1461 = vrot.slane %v1459, 4
    %v1462 = vrot.slane %v1025, 6
    %v1463 = vsel %vm1456, %v1461, %v1462
    %v1464 = vrot.slane %v1431, 6
    %v1465 = vrot.slane %v1464, 4
    %v1466 = vrot.slane %v122, 6
    %v1467 = vsel %vm1456, %v1465, %v1466
    %v1468 = vrot.slane %v1466, 4
    %v1469 = vrot.slane %v1026, 6
    %v1470 = vsel %vm1456, %v1468, %v1469
    %v1471 = vrot.slane %v1432, 6
    %v1472 = vrot.slane %v1471, 4
    %v1473 = vrot.slane %v125, 6
    %v1474 = vsel %vm1456, %v1472, %v1473
    %v1475 = vrot.slane %v1473, 4
    %v1476 = vrot.slane %v1027, 6
    %v1477 = vsel %vm1456, %v1475, %v1476
    %v1478 = vrot.slane %v1433, 6
    %v1479 = vrot.slane %v1478, 4
    %v1480 = vrot.slane %v128, 6
    %v1481 = vsel %vm1456, %v1479, %v1480
    %v1482 = vrot.slane %v1480, 4
    %v1483 = vrot.slane %v1028, 6
    %v1484 = vsel %vm1456, %v1482, %v1483
    %v1485 = vrot.slane %v1434, 6
    %v1486 = vrot.slane %v1485, 4
    %v1487 = vrot.slane %v131, 6
    %v1488 = vsel %vm1456, %v1486, %v1487
    %v1489 = vrot.slane %v1487, 4
    %v1490 = vrot.slane %v1029, 6
    %v1491 = vsel %vm1456, %v1489, %v1490
    %v1492 = vrot.slane %v1435, 6
    %v1493 = vrot.slane %v1492, 4
    %v1494 = vrot.slane %v134, 6
    %v1495 = vsel %vm1456, %v1493, %v1494
    %v1496 = vrot.slane %v1494, 4
    %v1497 = vrot.slane %v1030, 6
    %v1498 = vsel %vm1456, %v1496, %v1497
    %v1499 = vrot.slane %v1436, 6
    %v1500 = vrot.slane %v1499, 4
    %v1501 = vrot.slane %v137, 6
    %v1502 = vsel %vm1456, %v1500, %v1501
    %v1503 = vrot.slane %v1501, 4
    %v1504 = vrot.slane %v1031, 6
    %v1505 = vsel %vm1456, %v1503, %v1504
    %v1506 = vrot.slane %v1437, 6
    %v1507 = vrot.slane %v1506, 4
    %v1508 = vrot.slane %v140, 6
    %v1509 = vsel %vm1456, %v1507, %v1508
    %v1510 = vrot.slane %v1508, 4
    %v1511 = vrot.slane %v1032, 6
    %v1512 = vsel %vm1456, %v1510, %v1511
    %s1513 = scalar_lea.vmem [#allocation5], 256
    %v1514 = vld [vmem:[%s1513] sm:$0xf]
    %v1515 = vld [vmem:[%s1513 + $0x4] sm:$0xf]
    %v1516 = vld [vmem:[%s1513 + $0x8] sm:$0xf]
    %v1517 = vld [vmem:[%s1513 + $0xc] sm:$0xf]
    %v1518 = vld [vmem:[%s1513 + $0x10] sm:$0xf]
    %v1519 = vld [vmem:[%s1513 + $0x14] sm:$0xf]
    %v1520 = vld [vmem:[%s1513 + $0x18] sm:$0xf]
    %v1521 = vld [vmem:[%s1513 + $0x1c] sm:$0xf]
    %v1522 = vld [vmem:[%s1513 + $0x20] sm:$0xf]
    %v1523 = vld [vmem:[%s1513 + $0x24] sm:$0xf]
    %v1524 = vld [vmem:[%s1513 + $0x28] sm:$0xf]
    %v1525 = vld [vmem:[%s1513 + $0x2c] sm:$0xf]
    %v1526 = vld [vmem:[%s1513 + $0x30] sm:$0xf]
    %v1527 = vld [vmem:[%s1513 + $0x34] sm:$0xf]
    %v1528 = vld [vmem:[%s1513 + $0x38] sm:$0xf]
    %v1529 = vld [vmem:[%s1513 + $0x3c] sm:$0xf]
    %v1530 = vunpack.c.l.b16 %v1460
    %v1531 = vunpack.c.l.b16 %v1463
    %v1532 = vunpack.c.l.b16 %v1467
    %v1533 = vunpack.c.l.b16 %v1470
    %v1534 = vunpack.c.l.b16 %v1474
    %v1535 = vunpack.c.l.b16 %v1477
    %v1536 = vunpack.c.l.b16 %v1481
    %v1537 = vunpack.c.l.b16 %v1484
    %v1538 = vunpack.c.l.b16 %v1488
    %v1539 = vunpack.c.l.b16 %v1491
    %v1540 = vunpack.c.l.b16 %v1495
    %v1541 = vunpack.c.l.b16 %v1498
    %v1542 = vunpack.c.l.b16 %v1502
    %v1543 = vunpack.c.l.b16 %v1505
    %v1544 = vunpack.c.l.b16 %v1509
    %v1545 = vunpack.c.l.b16 %v1512
    %v1546 = vpack.c.b16 %v1531, %v1530
    %v1547 = vpack.c.b16 %v1533, %v1532
    %v1548 = vpack.c.b16 %v1535, %v1534
    %v1549 = vpack.c.b16 %v1537, %v1536
    %v1550 = vpack.c.b16 %v1539, %v1538
    %v1551 = vpack.c.b16 %v1541, %v1540
    %v1552 = vpack.c.b16 %v1543, %v1542
    %v1553 = vpack.c.b16 %v1545, %v1544
    %v1578 = vunpack.c.l.b16 %v1514
    %v1579 = vunpack.c.l.b16 %v1515
    %v1580 = vunpack.c.l.b16 %v1516
    %v1581 = vunpack.c.l.b16 %v1517
    %v1582 = vunpack.c.l.b16 %v1518
    %v1583 = vunpack.c.l.b16 %v1519
    %v1584 = vunpack.c.l.b16 %v1520
    %v1585 = vunpack.c.l.b16 %v1521
    %v1586 = vunpack.c.l.b16 %v1522
    %v1587 = vunpack.c.l.b16 %v1523
    %v1588 = vunpack.c.l.b16 %v1524
    %v1589 = vunpack.c.l.b16 %v1525
    %v1590 = vunpack.c.l.b16 %v1526
    %v1591 = vunpack.c.l.b16 %v1527
    %v1592 = vunpack.c.l.b16 %v1528
    %v1593 = vunpack.c.l.b16 %v1529
    %v1594 = vpack.c.b16 %v1579, %v1578
    %v1595 = vpack.c.b16 %v1581, %v1580
    %v1596 = vpack.c.b16 %v1583, %v1582
    %v1597 = vpack.c.b16 %v1585, %v1584
    %v1598 = vpack.c.b16 %v1587, %v1586
    %v1599 = vpack.c.b16 %v1589, %v1588
    %v1600 = vpack.c.b16 %v1591, %v1590
    %v1601 = vpack.c.b16 %v1593, %v1592
    %1610 = vmatprep.subr.bf16.mxu0 0
    %1611 = vmatpush1.bf16.msra.mxu0 %v1594
    %1612 = vmatprep.subr.bf16.mxu0 0
    %1613 = vmatpush1.bf16.msra.mxu0 %v1595
    %1614 = vmatprep.subr.bf16.mxu0 0
    %1615 = vmatpush1.bf16.msra.mxu0 %v1596
    %1616 = vmatprep.subr.bf16.mxu0 0
    %1617 = vmatpush1.bf16.msra.mxu0 %v1597
    %1618 = vmatprep.subr.bf16.mxu0 0
    %1619 = vmatpush1.bf16.msra.mxu0 %v1598
    %1620 = vmatprep.subr.bf16.mxu0 0
    %1621 = vmatpush1.bf16.msra.mxu0 %v1599
    %1622 = vmatprep.subr.bf16.mxu0 0
    %1623 = vmatpush1.bf16.msra.mxu0 %v1600
    %1624 = vmatprep.subr.bf16.mxu0 0
    %1625 = vmatpush1.bf16.msra.mxu0 %v1601
    %1626 = vmatprep.subr.bf16.mxu0 0
    %1627 = vmatpush1.bf16.msra.mxu0 0
    %1628 = vmatprep.subr.bf16.mxu0 0
    %1629 = vmatpush1.bf16.msra.mxu0 0
    %1630 = vmatprep.subr.bf16.mxu0 0
    %1631 = vmatpush1.bf16.msra.mxu0 0
    %1632 = vmatprep.subr.bf16.mxu0 0
    %1633 = vmatpush1.bf16.msra.mxu0 0
    %1634 = vmatprep.subr.bf16.mxu0 0
    %1635 = vmatpush1.bf16.msra.mxu0 0
    %1636 = vmatprep.subr.bf16.mxu0 0
    %1637 = vmatpush1.bf16.msra.mxu0 0
    %1638 = vmatprep.subr.bf16.mxu0 0
    %1639 = vmatpush1.bf16.msra.mxu0 0
    %1640 = vmatprep.subr.bf16.mxu0 0
    %1641 = vmatpush1.bf16.msra.mxu0 0
    %1642 = vmatprep.mubr.bf16.mxu0 0
    %1643 = vmatmul.mubr.bf16.gmra.mrb[0].mxu0 %v1546
    %v1644 = vpop.f32.mrb[0].mxu0
    %v1645 = vadd.f32 0.0, %v1644
    %v1646 = vpop.f32.mrb[0].mxu0
    %v1647 = vpop.f32.mrb[0].mxu0
    %v1648 = vadd.f32 0.0, %v1647
    %v1649 = vpop.f32.mrb[0].mxu0
    %1650 = vmatprep.mubr.bf16.mxu0 0
    %1651 = vmatmul.mubr.bf16.gmra.mrb[0].mxu0 %v1547
    %v1652 = vpop.f32.mrb[0].mxu0
    %v1653 = vadd.f32 0.0, %v1652
    %v1654 = vpop.f32.mrb[0].mxu0
    %v1655 = vpop.f32.mrb[0].mxu0
    %v1656 = vadd.f32 0.0, %v1655
    %v1657 = vpop.f32.mrb[0].mxu0
    %1658 = vmatprep.mubr.bf16.mxu0 0
    %1659 = vmatmul.mubr.bf16.gmra.mrb[0].mxu0 %v1548
    %v1660 = vpop.f32.mrb[0].mxu0
    %v1661 = vadd.f32 0.0, %v1660
    %v1662 = vpop.f32.mrb[0].mxu0
    %v1663 = vpop.f32.mrb[0].mxu0
    %v1664 = vadd.f32 0.0, %v1663
    %v1665 = vpop.f32.mrb[0].mxu0
    %1666 = vmatprep.mubr.bf16.mxu0 0
    %1667 = vmatmul.mubr.bf16.gmra.mrb[0].mxu0 %v1549
    %v1668 = vpop.f32.mrb[0].mxu0
    %v1669 = vadd.f32 0.0, %v1668
    %v1670 = vpop.f32.mrb[0].mxu0
    %v1671 = vpop.f32.mrb[0].mxu0
    %v1672 = vadd.f32 0.0, %v1671
    %v1673 = vpop.f32.mrb[0].mxu0
    %1674 = vmatprep.mubr.bf16.mxu0 0
    %1675 = vmatmul.mubr.bf16.gmra.mrb[0].mxu0 %v1550
    %v1676 = vpop.f32.mrb[0].mxu0
    %v1677 = vadd.f32 0.0, %v1676
    %v1678 = vpop.f32.mrb[0].mxu0
    %v1679 = vpop.f32.mrb[0].mxu0
    %v1680 = vadd.f32 0.0, %v1679
    %v1681 = vpop.f32.mrb[0].mxu0
    %1682 = vmatprep.mubr.bf16.mxu0 0
    %1683 = vmatmul.mubr.bf16.gmra.mrb[0].mxu0 %v1551
    %v1684 = vpop.f32.mrb[0].mxu0
    %v1685 = vadd.f32 0.0, %v1684
    %v1686 = vpop.f32.mrb[0].mxu0
    %v1687 = vpop.f32.mrb[0].mxu0
    %v1688 = vadd.f32 0.0, %v1687
    %v1689 = vpop.f32.mrb[0].mxu0
    %1690 = vmatprep.mubr.bf16.mxu0 0
    %1691 = vmatmul.mubr.bf16.gmra.mrb[0].mxu0 %v1552
    %v1692 = vpop.f32.mrb[0].mxu0
    %v1693 = vadd.f32 0.0, %v1692
    %v1694 = vpop.f32.mrb[0].mxu0
    %v1695 = vpop.f32.mrb[0].mxu0
    %v1696 = vadd.f32 0.0, %v1695
    %v1697 = vpop.f32.mrb[0].mxu0
    %1698 = vmatprep.mubr.bf16.mxu0 0
    %1699 = vmatmul.mubr.bf16.gmra.mrb[0].mxu0 %v1553
    %v1700 = vpop.f32.mrb[0].mxu0
    %v1701 = vadd.f32 0.0, %v1700
    %v1702 = vpop.f32.mrb[0].mxu0
    %v1703 = vpop.f32.mrb[0].mxu0
    %v1704 = vadd.f32 0.0, %v1703
    %v1705 = vpop.f32.mrb[0].mxu0
    %1706 = vdwg.mxu0
    %v1707 = vadd.f32 %v1414, %v1645
    %v1708 = vadd.f32 %v1415, %v1648
    %v1709 = vadd.f32 %v1416, %v1653
    %v1710 = vadd.f32 %v1417, %v1656
    %v1711 = vadd.f32 %v1418, %v1661
    %v1712 = vadd.f32 %v1419, %v1664
    %v1713 = vadd.f32 %v1420, %v1669
    %v1714 = vadd.f32 %v1421, %v1672
    %v1715 = vadd.f32 %v1422, %v1677
    %v1716 = vadd.f32 %v1423, %v1680
    %v1717 = vadd.f32 %v1424, %v1685
    %v1718 = vadd.f32 %v1425, %v1688
    %v1719 = vadd.f32 %v1426, %v1693
    %v1720 = vadd.f32 %v1427, %v1696
    %v1721 = vadd.f32 %v1428, %v1701
    %v1722 = vadd.f32 %v1429, %v1704
    %v1723 = vld [vmem:[%s2] sm:$0x1]
    %v1725 = vlaneseq
    %v1726 = vshrl.u32 %v1725, 7
    %v1727 = vsub.s32 0, %v1726
    %v1728 = vrot.slane %v1723, %v1727
    %v1730 = vadd.f32 %v1707, %v1728
    %v1731 = vadd.f32 %v1708, %v1728
    %v1732 = vadd.f32 %v1709, %v1728
    %v1733 = vadd.f32 %v1710, %v1728
    %v1734 = vadd.f32 %v1711, %v1728
    %v1735 = vadd.f32 %v1712, %v1728
    %v1736 = vadd.f32 %v1713, %v1728
    %v1737 = vadd.f32 %v1714, %v1728
    %v1738 = vadd.f32 %v1715, %v1728
    %v1739 = vadd.f32 %v1716, %v1728
    %v1740 = vadd.f32 %v1717, %v1728
    %v1741 = vadd.f32 %v1718, %v1728
    %v1742 = vadd.f32 %v1719, %v1728
    %v1743 = vadd.f32 %v1720, %v1728
    %v1744 = vadd.f32 %v1721, %v1728
    %v1745 = vadd.f32 %v1722, %v1728
    %v1746 = vmax.f32 %v1730, 0.0
    %v1747 = vmax.f32 %v1731, 0.0
    %v1748 = vmax.f32 %v1732, 0.0
    %v1749 = vmax.f32 %v1733, 0.0
    %v1750 = vmax.f32 %v1734, 0.0
    %v1751 = vmax.f32 %v1735, 0.0
    %v1752 = vmax.f32 %v1736, 0.0
    %v1753 = vmax.f32 %v1737, 0.0
    %v1754 = vmax.f32 %v1738, 0.0
    %v1755 = vmax.f32 %v1739, 0.0
    %v1756 = vmax.f32 %v1740, 0.0
    %v1757 = vmax.f32 %v1741, 0.0
    %v1758 = vmax.f32 %v1742, 0.0
    %v1759 = vmax.f32 %v1743, 0.0
    %v1760 = vmax.f32 %v1744, 0.0
    %v1761 = vmax.f32 %v1745, 0.0
    %v1762 = vlaneseq
    %v1763 = vshrl.u32 %v1762, 7
    %v1764 = vadd.s32 %v1763, 8
    %v1765 = vld [vmem:[%s3] sm:$0x1]
    %v1766 = vlaneseq
    %v1767 = vshrl.u32 %v1766, 7
    %v1768 = vsub.s32 0, %v1767
    %v1769 = vrot.slane %v1765, %v1768
    %vm1770 = vcmp.lt.s32.totalorder %v1763, %v1769
    %vm1771 = vcmp.lt.s32.totalorder %v1764, %v1769
    %v1772 = vsel %vm1770, 1, 0
    %v1773 = vsel %vm1771, 1, 0
    %vm1774 = vcmp.eq.s32.totalorder %v1772, 1
    %vm1775 = vcmp.eq.s32.totalorder %v1773, 1
    %v1776 = vsel %vm1774, %v1746, 0.0
    %v1777 = vsel %vm1775, %v1747, 0.0
    %v1778 = vsel %vm1774, %v1748, 0.0
    %v1779 = vsel %vm1775, %v1749, 0.0
    %v1780 = vsel %vm1774, %v1750, 0.0
    %v1781 = vsel %vm1775, %v1751, 0.0
    %v1782 = vsel %vm1774, %v1752, 0.0
    %v1783 = vsel %vm1775, %v1753, 0.0
    %v1784 = vsel %vm1774, %v1754, 0.0
    %v1785 = vsel %vm1775, %v1755, 0.0
    %v1786 = vsel %vm1774, %v1756, 0.0
    %v1787 = vsel %vm1775, %v1757, 0.0
    %v1788 = vsel %vm1774, %v1758, 0.0
    %v1789 = vsel %vm1775, %v1759, 0.0
    %v1790 = vsel %vm1774, %v1760, 0.0
    %v1791 = vsel %vm1775, %v1761, 0.0
    %v1792 = vmax.f32 %v1776, %v1777
    %v1793 = vrot.slane %v1792, 4
    %v1794 = vmax.f32 %v1792, %v1793
    %v1795 = vrot.slane %v1794, 2
    %v1796 = vmax.f32 %v1794, %v1795
    %v1797 = vrot.slane %v1796, 1
    %v1798 = vmax.f32 %v1796, %v1797
    %v1799 = vmax.f32 %v1778, %v1779
    %v1800 = vrot.slane %v1799, 4
    %v1801 = vmax.f32 %v1799, %v1800
    %v1802 = vrot.slane %v1801, 2
    %v1803 = vmax.f32 %v1801, %v1802
    %v1804 = vrot.slane %v1803, 1
    %v1805 = vmax.f32 %v1803, %v1804
    %v1806 = vmax.f32 %v1780, %v1781
    %v1807 = vrot.slane %v1806, 4
    %v1808 = vmax.f32 %v1806, %v1807
    %v1809 = vrot.slane %v1808, 2
    %v1810 = vmax.f32 %v1808, %v1809
    %v1811 = vrot.slane %v1810, 1
    %v1812 = vmax.f32 %v1810, %v1811
    %v1813 = vmax.f32 %v1782, %v1783
    %v1814 = vrot.slane %v1813, 4
    %v1815 = vmax.f32 %v1813, %v1814
    %v1816 = vrot.slane %v1815, 2
    %v1817 = vmax.f32 %v1815, %v1816
    %v1818 = vrot.slane %v1817, 1
    %v1819 = vmax.f32 %v1817, %v1818
    %v1820 = vmax.f32 %v1784, %v1785
    %v1821 = vrot.slane %v1820, 4
    %v1822 = vmax.f32 %v1820, %v1821
    %v1823 = vrot.slane %v1822, 2
    %v1824 = vmax.f32 %v1822, %v1823
    %v1825 = vrot.slane %v1824, 1
    %v1826 = vmax.f32 %v1824, %v1825
    %v1827 = vmax.f32 %v1786, %v1787
    %v1828 = vrot.slane %v1827, 4
    %v1829 = vmax.f32 %v1827, %v1828
    %v1830 = vrot.slane %v1829, 2
    %v1831 = vmax.f32 %v1829, %v1830
    %v1832 = vrot.slane %v1831, 1
    %v1833 = vmax.f32 %v1831, %v1832
    %v1834 = vmax.f32 %v1788, %v1789
    %v1835 = vrot.slane %v1834, 4
    %v1836 = vmax.f32 %v1834, %v1835
    %v1837 = vrot.slane %v1836, 2
    %v1838 = vmax.f32 %v1836, %v1837
    %v1839 = vrot.slane %v1838, 1
    %v1840 = vmax.f32 %v1838, %v1839
    %v1841 = vmax.f32 %v1790, %v1791
    %v1842 = vrot.slane %v1841, 4
    %v1843 = vmax.f32 %v1841, %v1842
    %v1844 = vrot.slane %v1843, 2
    %v1845 = vmax.f32 %v1843, %v1844
    %v1846 = vrot.slane %v1845, 1
    %v1847 = vmax.f32 %v1845, %v1846
    %v1848 = vpack.c.bf16 %v1798, %v1798
    %v1849 = vpack.c.bf16 %v1805, %v1805
    %v1850 = vpack.c.bf16 %v1812, %v1812
    %v1851 = vpack.c.bf16 %v1819, %v1819
    %v1852 = vpack.c.bf16 %v1826, %v1826
    %v1853 = vpack.c.bf16 %v1833, %v1833
    %v1854 = vpack.c.bf16 %v1840, %v1840
    %v1855 = vpack.c.bf16 %v1847, %v1847
    %v1856 = vld [vmem:[#allocation7] sm:$0xf]
    %v1857 = vld [vmem:[#allocation7 + $0x4] sm:$0xf]
    %v1858 = vld [vmem:[#allocation7 + $0x8] sm:$0xf]
    %v1859 = vld [vmem:[#allocation7 + $0xc] sm:$0xf]
    %v1860 = vld [vmem:[#allocation7 + $0x10] sm:$0xf]
    %v1861 = vld [vmem:[#allocation7 + $0x14] sm:$0xf]
    %v1862 = vld [vmem:[#allocation7 + $0x18] sm:$0xf]
    %v1863 = vld [vmem:[#allocation7 + $0x1c] sm:$0xf]
    %v1864 = vld [vmem:[#allocation7 + $0x20] sm:$0xf]
    %v1865 = vld [vmem:[#allocation7 + $0x24] sm:$0xf]
    %v1866 = vld [vmem:[#allocation7 + $0x28] sm:$0xf]
    %v1867 = vld [vmem:[#allocation7 + $0x2c] sm:$0xf]
    %v1868 = vld [vmem:[#allocation7 + $0x30] sm:$0xf]
    %v1869 = vld [vmem:[#allocation7 + $0x34] sm:$0xf]
    %v1870 = vld [vmem:[#allocation7 + $0x38] sm:$0xf]
    %v1871 = vld [vmem:[#allocation7 + $0x3c] sm:$0xf]
    %v1872 = vld [vmem:[%s5] sm:$0x1]
    %v1874 = vlaneseq
    %v1875 = vshrl.u32 %v1874, 7
    %v1876 = vsub.s32 0, %v1875
    %v1877 = vrot.slane %v1872, %v1876
    %v1887 = vunpack.c.l.b16 %v1848
    %v1888 = vunpack.c.l.b16 %v1849
    %v1889 = vunpack.c.l.b16 %v1850
    %v1890 = vunpack.c.l.b16 %v1851
    %v1891 = vunpack.c.l.b16 %v1852
    %v1892 = vunpack.c.l.b16 %v1853
    %v1893 = vunpack.c.l.b16 %v1854
    %v1894 = vunpack.c.l.b16 %v1855
    %vm1895 = vcmask 1041409
    %v1896 = vsel %vm1895, %v1888, %v1887
    %vm1897 = vcmask 1042434
    %v1898 = vsel %vm1897, %v1889, %v1896
    %vm1899 = vcmask 1043459
    %v1900 = vsel %vm1899, %v1890, %v1898
    %vm1901 = vcmask 1044484
    %v1902 = vsel %vm1901, %v1891, %v1900
    %vm1903 = vcmask 1045509
    %v1904 = vsel %vm1903, %v1892, %v1902
    %vm1905 = vcmask 1046534
    %v1906 = vsel %vm1905, %v1893, %v1904
    %vm1907 = vcmask 1047559
    %v1908 = vsel %vm1907, %v1894, %v1906
    %v1909 = vpack.c.b16 %v1908, %v1908
    %v1927 = vunpack.c.l.b16 %v1856
    %v1928 = vunpack.c.l.b16 %v1857
    %v1929 = vunpack.c.l.b16 %v1858
    %v1930 = vunpack.c.l.b16 %v1859
    %v1931 = vunpack.c.l.b16 %v1860
    %v1932 = vunpack.c.l.b16 %v1861
    %v1933 = vunpack.c.l.b16 %v1862
    %v1934 = vunpack.c.l.b16 %v1863
    %v1935 = vunpack.c.l.b16 %v1864
    %v1936 = vunpack.c.l.b16 %v1865
    %v1937 = vunpack.c.l.b16 %v1866
    %v1938 = vunpack.c.l.b16 %v1867
    %v1939 = vunpack.c.l.b16 %v1868
    %v1940 = vunpack.c.l.b16 %v1869
    %v1941 = vunpack.c.l.b16 %v1870
    %v1942 = vunpack.c.l.b16 %v1871
    %v1943 = vpack.c.b16 %v1928, %v1927
    %v1944 = vpack.c.b16 %v1930, %v1929
    %v1945 = vpack.c.b16 %v1932, %v1931
    %v1946 = vpack.c.b16 %v1934, %v1933
    %v1947 = vpack.c.b16 %v1936, %v1935
    %v1948 = vpack.c.b16 %v1938, %v1937
    %v1949 = vpack.c.b16 %v1940, %v1939
    %v1950 = vpack.c.b16 %v1942, %v1941
    %1959 = vmatprep.subr.bf16.mxu0 0
    %1960 = vmatpush1.bf16.msra.mxu0 %v1943
    %1961 = vmatprep.subr.bf16.mxu0 0
    %1962 = vmatpush1.bf16.msra.mxu0 %v1944
    %1963 = vmatprep.subr.bf16.mxu0 0
    %1964 = vmatpush1.bf16.msra.mxu0 %v1945
    %1965 = vmatprep.subr.bf16.mxu0 0
    %1966 = vmatpush1.bf16.msra.mxu0 %v1946
    %1967 = vmatprep.subr.bf16.mxu0 0
    %1968 = vmatpush1.bf16.msra.mxu0 %v1947
    %1969 = vmatprep.subr.bf16.mxu0 0
    %1970 = vmatpush1.bf16.msra.mxu0 %v1948
    %1971 = vmatprep.subr.bf16.mxu0 0
    %1972 = vmatpush1.bf16.msra.mxu0 %v1949
    %1973 = vmatprep.subr.bf16.mxu0 0
    %1974 = vmatpush1.bf16.msra.mxu0 %v1950
    %1975 = vmatprep.subr.bf16.mxu0 0
    %1976 = vmatpush1.bf16.msra.mxu0 0
    %1977 = vmatprep.subr.bf16.mxu0 0
    %1978 = vmatpush1.bf16.msra.mxu0 0
    %1979 = vmatprep.subr.bf16.mxu0 0
    %1980 = vmatpush1.bf16.msra.mxu0 0
    %1981 = vmatprep.subr.bf16.mxu0 0
    %1982 = vmatpush1.bf16.msra.mxu0 0
    %1983 = vmatprep.subr.bf16.mxu0 0
    %1984 = vmatpush1.bf16.msra.mxu0 0
    %1985 = vmatprep.subr.bf16.mxu0 0
    %1986 = vmatpush1.bf16.msra.mxu0 0
    %1987 = vmatprep.subr.bf16.mxu0 0
    %1988 = vmatpush1.bf16.msra.mxu0 0
    %1989 = vmatprep.subr.bf16.mxu0 0
    %1990 = vmatpush1.bf16.msra.mxu0 0
    %1991 = vmatprep.mubr.bf16.mxu0 0
    %1992 = vmatmul.mubr.bf16.gmra.mrb[0].mxu0 %v1909
    %v1993 = vpop.f32.mrb[0].mxu0
    %v1994 = vadd.f32 %v1877, %v1993
    %v1995 = vpop.f32.mrb[0].mxu0
    %v1996 = vpop.f32.mrb[0].mxu0
    %v1997 = vpop.f32.mrb[0].mxu0
    %1998 = vdwg.mxu0
    %v1999 = vmax.f32 %v1994, 0.0
    %v2000 = vpack.c.bf16 %v1999, %v1999
    %v2001 = vld [vmem:[#allocation8] sm:$0xf]
    %v2002 = vld [vmem:[#allocation8 + $0x4] sm:$0xf]
    %v2003 = vld [vmem:[#allocation8 + $0x8] sm:$0xf]
    %v2004 = vld [vmem:[#allocation8 + $0xc] sm:$0xf]
    %v2005 = vld [vmem:[#allocation8 + $0x10] sm:$0xf]
    %v2006 = vld [vmem:[#allocation8 + $0x14] sm:$0xf]
    %v2007 = vld [vmem:[#allocation8 + $0x18] sm:$0xf]
    %v2008 = vld [vmem:[#allocation8 + $0x1c] sm:$0xf]
    %v2009 = vld [vmem:[#allocation8 + $0x20] sm:$0xf]
    %v2010 = vld [vmem:[#allocation8 + $0x24] sm:$0xf]
    %v2011 = vld [vmem:[#allocation8 + $0x28] sm:$0xf]
    %v2012 = vld [vmem:[#allocation8 + $0x2c] sm:$0xf]
    %v2013 = vld [vmem:[#allocation8 + $0x30] sm:$0xf]
    %v2014 = vld [vmem:[#allocation8 + $0x34] sm:$0xf]
    %v2015 = vld [vmem:[#allocation8 + $0x38] sm:$0xf]
    %v2016 = vld [vmem:[#allocation8 + $0x3c] sm:$0xf]
    %v2017 = vld [vmem:[%s7] sm:$0x1]
    %v2019 = vlaneseq
    %v2020 = vshrl.u32 %v2019, 7
    %v2021 = vsub.s32 0, %v2020
    %v2022 = vrot.slane %v2017, %v2021
    %v2040 = vunpack.c.l.b16 %v2001
    %v2041 = vunpack.c.l.b16 %v2002
    %v2042 = vunpack.c.l.b16 %v2003
    %v2043 = vunpack.c.l.b16 %v2004
    %v2044 = vunpack.c.l.b16 %v2005
    %v2045 = vunpack.c.l.b16 %v2006
    %v2046 = vunpack.c.l.b16 %v2007
    %v2047 = vunpack.c.l.b16 %v2008
    %v2048 = vunpack.c.l.b16 %v2009
    %v2049 = vunpack.c.l.b16 %v2010
    %v2050 = vunpack.c.l.b16 %v2011
    %v2051 = vunpack.c.l.b16 %v2012
    %v2052 = vunpack.c.l.b16 %v2013
    %v2053 = vunpack.c.l.b16 %v2014
    %v2054 = vunpack.c.l.b16 %v2015
    %v2055 = vunpack.c.l.b16 %v2016
    %v2056 = vpack.c.b16 %v2041, %v2040
    %v2057 = vpack.c.b16 %v2043, %v2042
    %v2058 = vpack.c.b16 %v2045, %v2044
    %v2059 = vpack.c.b16 %v2047, %v2046
    %v2060 = vpack.c.b16 %v2049, %v2048
    %v2061 = vpack.c.b16 %v2051, %v2050
    %v2062 = vpack.c.b16 %v2053, %v2052
    %v2063 = vpack.c.b16 %v2055, %v2054
    %2072 = vmatprep.subr.bf16.mxu0 0
    %2073 = vmatpush1.bf16.msra.mxu0 %v2056
    %2074 = vmatprep.subr.bf16.mxu0 0
    %2075 = vmatpush1.bf16.msra.mxu0 %v2057
    %2076 = vmatprep.subr.bf16.mxu0 0
    %2077 = vmatpush1.bf16.msra.mxu0 %v2058
    %2078 = vmatprep.subr.bf16.mxu0 0
    %2079 = vmatpush1.bf16.msra.mxu0 %v2059
    %2080 = vmatprep.subr.bf16.mxu0 0
    %2081 = vmatpush1.bf16.msra.mxu0 %v2060
    %2082 = vmatprep.subr.bf16.mxu0 0
    %2083 = vmatpush1.bf16.msra.mxu0 %v2061
    %2084 = vmatprep.subr.bf16.mxu0 0
    %2085 = vmatpush1.bf16.msra.mxu0 %v2062
    %2086 = vmatprep.subr.bf16.mxu0 0
    %2087 = vmatpush1.bf16.msra.mxu0 %v2063
    %2088 = vmatprep.subr.bf16.mxu0 0
    %2089 = vmatpush1.bf16.msra.mxu0 0
    %2090 = vmatprep.subr.bf16.mxu0 0
    %2091 = vmatpush1.bf16.msra.mxu0 0
    %2092 = vmatprep.subr.bf16.mxu0 0
    %2093 = vmatpush1.bf16.msra.mxu0 0
    %2094 = vmatprep.subr.bf16.mxu0 0
    %2095 = vmatpush1.bf16.msra.mxu0 0
    %2096 = vmatprep.subr.bf16.mxu0 0
    %2097 = vmatpush1.bf16.msra.mxu0 0
    %2098 = vmatprep.subr.bf16.mxu0 0
    %2099 = vmatpush1.bf16.msra.mxu0 0
    %2100 = vmatprep.subr.bf16.mxu0 0
    %2101 = vmatpush1.bf16.msra.mxu0 0
    %2102 = vmatprep.subr.bf16.mxu0 0
    %2103 = vmatpush1.bf16.msra.mxu0 0
    %2104 = vmatprep.mubr.bf16.mxu0 0
    %2105 = vmatmul.mubr.bf16.gmra.mrb[0].mxu0 %v2000
    %v2106 = vpop.f32.mrb[0].mxu0
    %v2107 = vadd.f32 %v2022, %v2106
    %v2108 = vpop.f32.mrb[0].mxu0
    %v2109 = vpop.f32.mrb[0].mxu0
    %v2110 = vpop.f32.mrb[0].mxu0
    %2111 = vdwg.mxu0
    %v2112 = vmax.f32 %v2107, 0.0
    %2113 = vst [vmem:[#allocation10] sm:$0xff] %v2112
    // Predicated region
    $region50: #{tpu_custom_call.1} parent=1 // pred_check
      _
    $region51: #{tpu_custom_call.1} parent=1 // pred_check_branch
      %2115 = sbr.rel (0) target = $region53
    $region52: #{tpu_custom_call.1} parent=1 // pred_region
      %s2117 = ssub.s32 128, 128
      %2118 = vsyncadd [#allocation4], %s2117
      %s2120 = sshll.u32 [#allocation10], 4
      %s2121 = int_to_ptr.vmem [resolvable:$true] %s2120
      %2123 = dma.vmem_to_hbm [thread:$0]  %s2121, 128, %s8, [#allocation4]
    $region53: #{tpu_custom_call.1} parent=1 // pred_fallthru
      _
    // Predicated region
    $region54: #{tpu_custom_call.1} parent=1 // pred_check
      _
    $region55: #{tpu_custom_call.1} parent=1 // pred_check_branch
      %2125 = sbr.rel (0) target = $region57
    $region56: #{tpu_custom_call.1} parent=1 // pred_region
      %2126 = dma.done [#allocation4], 128
    $region57: #{tpu_custom_call.1} parent=1 // pred_fallthru
      _
    %2127 = vsyncpa [#allocation3], 1
    %2128 = vsyncpa [#allocation6], 1
    %2129 = vsyncpa [#allocation9], 1
    %2130 = vsyncpa [#allocation4], 1

</llo_original>
